<compile_context>
chip_gen: v7x
topology: tpu7x:2x2x1
jax: 0.10.0
libtpu: 0.0.40
codegen_flags: <defaults>
</compile_context>

<pallas_src>
import jax
import jax.numpy as jnp
from jax.experimental import pallas as pl
from jax.experimental.pallas import tpu as pltpu


_VMEM_LIMIT_BYTES = 48 << 20     # v7x-safe (64 MiB/TC); well inside v5e/v6e 128 MiB
_TILE_BUDGET_BYTES = 32 << 20    # target resident footprint per grid step


def _footprint_bytes(t, *, H, W, cut, cutn, kw, itemsize):
    """Rough VMEM footprint for bc_tile = t: double-buffered pipeline blocks
    + f32 pooling temporaries + the small resident constant matrices."""
    R = t * cut
    x_blk = 2 * t * H * W * itemsize                      # x, double-buffered
    tmps = 2 * R * W * 4 + R * kw * cut * 4               # acc, mx, sel (f32)
    io = 2 * 2 * R * cutn * cut * 4                       # noise + out, d-buf
    mats = 2 * 4 * (W * cut + W * kw * cut + cut * cutn * cut + cutn * cut)
    return x_blk + tmps + io + mats


def _pick_bc_tile(BC, *, H, W, cut, cutn, itemsize,
                  budget_bytes=_TILE_BUDGET_BYTES):
    """Largest divisor of B*C whose estimated footprint fits the budget,
    preferring an even grid length (v7x 2 TensorCores on the parallel axis)."""
    kw = W // cut

    def aligned(t):
        # last-2-dim rule: sublane dims must be %8 or equal the full extent
        return ((t * H) % 8 == 0 or t == BC) and ((t * cut) % 8 == 0 or t == BC)

    fits = [t for t in range(1, BC + 1)
            if BC % t == 0 and aligned(t)
            and _footprint_bytes(t, H=H, W=W, cut=cut, cutn=cutn, kw=kw,
                                 itemsize=itemsize) <= budget_bytes]
    if not fits:
        cands = [t for t in range(1, BC + 1) if BC % t == 0 and aligned(t)]
        return min(cands) if cands else BC
    even = [t for t in fits if (BC // t) % 2 == 0 or BC // t == 1]
    return max(even) if even else max(fits)


def _make_kernel(*, kh, kw, cut, R):
    """R = bc_tile * cut  (rows of the pooled / output tile)."""
    inv_avg = 0.5 / (kh * kw)
    hi = jax.lax.Precision.HIGHEST   # load-bearing: keeps 0/1 matmuls exact in f32

    def kernel(x_ref, noise_ref, a_sum_ref, a_max_ref, rep_ref, facs_ref, o_ref):
        # ---- kh (sublane) reduction: strided row loads; x read from HBM once ----
        if kh == 1:
            acc = x_ref[...].astype(jnp.float32)           # (R, W)
            mx = acc
        else:
            acc = x_ref[pl.ds(0, R, stride=kh), :].astype(jnp.float32)
            mx = acc
            for p in range(1, kh):
                v = x_ref[pl.ds(p, R, stride=kh), :].astype(jnp.float32)
                acc = acc + v
                mx = jnp.maximum(mx, v)
        # TODO(synk): on v5e with bf16 inputs, verify the strided sublane loads
        # lower without per-row unpack; otherwise upcast the x block to f32 once.

        # ---- kw (lane) reduction on the otherwise-idle MXU (2 matmuls total) ----
        sum_hw = jnp.dot(acc, a_sum_ref[...], precision=hi,
                         preferred_element_type=jnp.float32)          # (R, cut)
        sel = jnp.dot(mx, a_max_ref[...], precision=hi,
                      preferred_element_type=jnp.float32)             # (R, kw*cut)
        m_hw = sel[:, 0:cut]
        for q in range(1, kw):
            m_hw = jnp.maximum(m_hw, sel[:, q * cut:(q + 1) * cut])   # VPU max

        pooled = sum_hw * inv_avg + m_hw * 0.5                        # (R, cut)

        # ---- replicate across the cutn lane groups (exact 0/1 matmul), add
        #      per-cutout noise, emit ONE wide lane-dense store ----
        pooled_wide = jnp.dot(pooled, rep_ref[...], precision=hi,
                              preferred_element_type=jnp.float32)     # (R, cutn*cut)
        o_ref[...] = (pooled_wide
                      + facs_ref[...] * noise_ref[...].astype(jnp.float32)
                      ).astype(o_ref.dtype)

    return kernel


def make_cutouts(x, *, cut_size, cutn, noise_fac=0.1, key=None, bc_tile=None):
    """Pallas implementation of MakeCutouts.forward (augs = identity)."""
    B, C, H, W = x.shape
    assert H % cut_size == 0 and W % cut_size == 0, "need divisible pooling"
    cut = cut_size
    kh, kw = H // cut, W // cut
    BC = B * C

    if bc_tile is None:
        bc_tile = _pick_bc_tile(BC, H=H, W=W, cut=cut, cutn=cutn,
                                itemsize=x.dtype.itemsize)
    assert BC % bc_tile == 0
    nbc = BC // bc_tile
    R = bc_tile * cut
    assert _footprint_bytes(bc_tile, H=H, W=W, cut=cut, cutn=cutn, kw=kw,
                            itemsize=x.dtype.itemsize) <= _VMEM_LIMIT_BYTES, (
        "single BC tile exceeds the VMEM limit; tile W or group fewer cutouts")

    # --- x glue: pure reshape only, no HBM copy ---
    x2d = x.reshape(BC * H, W)

    # TODO(synk): kornia random augmentations (self.augs) have no clean Pallas
    # equivalent; treated as identity (empty augment list).
    # TODO(synk): noise could be generated in-kernel (pltpu.prng_seed +
    # pltpu.stateful_normal) to roughly halve HBM traffic of the noise stage;
    # kept external so the output is bitwise-checkable vs the jax.random ref.
    k1, k2 = jax.random.split(key)
    facs = jax.random.uniform(k1, (cutn,), jnp.float32, 0.0, noise_fac)
    noise = jax.random.normal(k2, (cutn, B, C, cut, cut), x.dtype)
    # lane-dense layout: rows = (bc, i), cols = (n, j); tiny tensor, cheap copy
    noise2d = noise.transpose(1, 2, 3, 0, 4).reshape(BC * cut, cutn * cut)

    # --- small resident constants (precomputed once, constant index_map) ---
    w_ids = jnp.arange(W, dtype=jnp.int32)[:, None]
    j_ids = jnp.arange(cut, dtype=jnp.int32)[None, :]
    a_sum = ((w_ids >= j_ids * kw) & (w_ids < (j_ids + 1) * kw)
             ).astype(jnp.float32)                                   # (W, cut)
    qj = jnp.arange(kw * cut, dtype=jnp.int32)[None, :]              # col = q*cut+j
    a_max = (w_ids == (qj % cut) * kw + qj // cut
             ).astype(jnp.float32)                                   # (W, kw*cut)
    nj = jnp.arange(cutn * cut, dtype=jnp.int32)[None, :]            # col = n*cut+j
    rep = (jnp.arange(cut, dtype=jnp.int32)[:, None] == nj % cut
           ).astype(jnp.float32)                                     # (cut, cutn*cut)
    # per-cutout fac, broadcast over B and C (matches the reference; note the
    # original torch (cutn,1,1,1) broadcast is only well-defined for B == 1)
    facs_row = jnp.repeat(facs, cut).reshape(1, cutn * cut)          # f32 row

    kernel = _make_kernel(kh=kh, kw=kw, cut=cut, R=R)

    out2d = pl.pallas_call(
        kernel,
        out_shape=jax.ShapeDtypeStruct((BC * cut, cutn * cut), x.dtype),
        grid=(nbc,),
        in_specs=[
            pl.BlockSpec((bc_tile * H, W), lambda b: (b, 0)),        # x (once/tile)
            pl.BlockSpec((R, cutn * cut), lambda b: (b, 0)),         # noise
            pl.BlockSpec((W, cut), lambda b: (0, 0)),                # a_sum (resident)
            pl.BlockSpec((W, kw * cut), lambda b: (0, 0)),           # a_max (resident)
            pl.BlockSpec((cut, cutn * cut), lambda b: (0, 0)),       # rep   (resident)
            pl.BlockSpec((1, cutn * cut), lambda b: (0, 0)),         # facs  (resident)
        ],
        out_specs=pl.BlockSpec((R, cutn * cut), lambda b: (b, 0)),
        compiler_params=pltpu.CompilerParams(
            dimension_semantics=("parallel",),
            vmem_limit_bytes=_VMEM_LIMIT_BYTES),
    )(x2d, noise2d, a_sum, a_max, rep, facs_row)

    # cheap wrapper reorder of the tiny output to the torch layout
    out = (out2d.reshape(B, C, cut, cutn, cut)
                 .transpose(3, 0, 1, 2, 4)
                 .reshape(cutn * B, C, cut, cut))
    return out


def _reference(x, facs, noise, cut_size, cutn):
    """Pure-JAX reference of the forward pass (augs = identity)."""
    B, C, H, W = x.shape
    kh, kw = H // cut_size, W // cut_size
    r = x.reshape(B, C, cut_size, kh, cut_size, kw)
    avg = r.mean(axis=(3, 5))
    mx = r.max(axis=(3, 5))
    cutout = (avg + mx) / 2.0
    batch = jnp.concatenate([cutout] * cutn, axis=0)
    facs_b = jnp.repeat(facs, B).reshape(cutn * B, 1, 1, 1)
    return batch + facs_b * noise


if __name__ == "__main__":
    B, C, H, W = 2, 4, 16, 16
    cut_size, cutn, noise_fac = 8, 4, 0.1

    key = jax.random.PRNGKey(0)
    kx, knoise = jax.random.split(key)
    x = jax.random.normal(kx, (B, C, H, W), jnp.float32)

    out = make_cutouts(x, cut_size=cut_size, cutn=cutn,
                       noise_fac=noise_fac, key=knoise)
    out = jax.block_until_ready(out)
    assert out.shape == (cutn * B, C, cut_size, cut_size)
    assert out.dtype == jnp.float32

    # correctness check against pure-JAX reference with the same randoms
    k1, k2 = jax.random.split(knoise)
    facs = jax.random.uniform(k1, (cutn,), jnp.float32, 0.0, noise_fac)
    noise = jax.random.normal(k2, (cutn, B, C, cut_size, cut_size), jnp.float32)
    ref = _reference(x, facs,
                     noise.reshape(cutn * B, C, cut_size, cut_size),
                     cut_size, cutn)
    assert jnp.allclose(out, ref, atol=1e-5, rtol=1e-5), \
        float(jnp.max(jnp.abs(out - ref)))

    print("KERNEL_OK")
</pallas_src>

<mosaic_0001>
module attributes {stable_mosaic.version = 11 : i64} {
  func.func @kernel(%arg0: i32, %arg1: memref<128x16xf32, #tpu.memory_space<vmem>>, %arg2: memref<64x32xf32, #tpu.memory_space<vmem>>, %arg3: memref<16x8xf32, #tpu.memory_space<vmem>>, %arg4: memref<16x16xf32, #tpu.memory_space<vmem>>, %arg5: memref<8x32xf32, #tpu.memory_space<vmem>>, %arg6: memref<1x32xf32, #tpu.memory_space<vmem>>, %arg7: memref<64x32xf32, #tpu.memory_space<vmem>>) attributes {dimension_semantics = [#tpu.dimension_semantics<parallel>], iteration_bounds = array<i64: 1>, scalar_prefetch = 0 : i64, scratch_operands = 0 : i64, tpu.core_type = #tpu.core_type<tc>, window_params = [{transform_indices = @transform_0, window_bounds = array<i64: 128, 16>}, {transform_indices = @transform_1, window_bounds = array<i64: 64, 32>}, {pipeline_mode = #tpu.pipeline_mode<synchronous>, transform_indices = @transform_2, window_bounds = array<i64: 16, 8>}, {pipeline_mode = #tpu.pipeline_mode<synchronous>, transform_indices = @transform_3, window_bounds = array<i64: 16, 16>}, {pipeline_mode = #tpu.pipeline_mode<synchronous>, transform_indices = @transform_4, window_bounds = array<i64: 8, 32>}, {pipeline_mode = #tpu.pipeline_mode<synchronous>, transform_indices = @transform_5, window_bounds = array<i64: 1, 32>}, {transform_indices = @transform_6, window_bounds = array<i64: 64, 32>}]} {
    %c0 = arith.constant 0 : index
    %c0_0 = arith.constant 0 : index
    %0 = tpu.strided_load %arg1[%c0, %c0_0] {strides = array<i32: 2, 1>} : memref<128x16xf32, #tpu.memory_space<vmem>>, vector<64x16xf32>
    %c1 = arith.constant 1 : index
    %c0_1 = arith.constant 0 : index
    %1 = tpu.strided_load %arg1[%c1, %c0_1] {strides = array<i32: 2, 1>} : memref<128x16xf32, #tpu.memory_space<vmem>>, vector<64x16xf32>
    %2 = arith.addf %0, %1 : vector<64x16xf32>
    %3 = arith.maximumf %0, %1 : vector<64x16xf32>
    %c0_2 = arith.constant 0 : index
    %c0_3 = arith.constant 0 : index
    %4 = vector.load %arg3[%c0_2, %c0_3] : memref<16x8xf32, #tpu.memory_space<vmem>>, vector<16x8xf32>
    %cst = arith.constant dense<0.000000e+00> : vector<64x8xf32>
    %5 = tpu.matmul %2, %4, %cst {dimension_numbers = #tpu.dot_dimension_numbers<[1], [0], [0], [1], [0, 0, 1, 1], [], []>, precision = #tpu.contract_precision<fp32>} : vector<64x16xf32>, vector<16x8xf32>, vector<64x8xf32> -> vector<64x8xf32>
    %c0_4 = arith.constant 0 : index
    %c0_5 = arith.constant 0 : index
    %6 = vector.load %arg4[%c0_4, %c0_5] : memref<16x16xf32, #tpu.memory_space<vmem>>, vector<16x16xf32>
    %cst_6 = arith.constant dense<0.000000e+00> : vector<64x16xf32>
    %7 = tpu.matmul %3, %6, %cst_6 {dimension_numbers = #tpu.dot_dimension_numbers<[1], [0], [0], [1], [0, 0, 1, 1], [], []>, precision = #tpu.contract_precision<fp32>} : vector<64x16xf32>, vector<16x16xf32>, vector<64x16xf32> -> vector<64x16xf32>
    %8 = vector.extract_strided_slice %7 {offsets = [0, 0], sizes = [64, 8], strides = [1, 1]} : vector<64x16xf32> to vector<64x8xf32>
    %9 = vector.extract_strided_slice %7 {offsets = [0, 8], sizes = [64, 8], strides = [1, 1]} : vector<64x16xf32> to vector<64x8xf32>
    %10 = arith.maximumf %8, %9 : vector<64x8xf32>
    %cst_7 = arith.constant 1.250000e-01 : f32
    %11 = vector.broadcast %cst_7 : f32 to vector<64x8xf32>
    %12 = arith.mulf %5, %11 : vector<64x8xf32>
    %cst_8 = arith.constant 5.000000e-01 : f32
    %13 = vector.broadcast %cst_8 : f32 to vector<64x8xf32>
    %14 = arith.mulf %10, %13 : vector<64x8xf32>
    %15 = arith.addf %12, %14 : vector<64x8xf32>
    %c0_9 = arith.constant 0 : index
    %c0_10 = arith.constant 0 : index
    %16 = vector.load %arg5[%c0_9, %c0_10] : memref<8x32xf32, #tpu.memory_space<vmem>>, vector<8x32xf32>
    %cst_11 = arith.constant dense<0.000000e+00> : vector<64x32xf32>
    %17 = tpu.matmul %15, %16, %cst_11 {dimension_numbers = #tpu.dot_dimension_numbers<[1], [0], [0], [1], [0, 0, 1, 1], [], []>, precision = #tpu.contract_precision<fp32>} : vector<64x8xf32>, vector<8x32xf32>, vector<64x32xf32> -> vector<64x32xf32>
    %c0_12 = arith.constant 0 : index
    %c0_13 = arith.constant 0 : index
    %18 = vector.load %arg6[%c0_12, %c0_13] : memref<1x32xf32, #tpu.memory_space<vmem>>, vector<1x32xf32>
    %c0_14 = arith.constant 0 : index
    %c0_15 = arith.constant 0 : index
    %19 = vector.load %arg2[%c0_14, %c0_15] : memref<64x32xf32, #tpu.memory_space<vmem>>, vector<64x32xf32>
    %20 = vector.broadcast %18 : vector<1x32xf32> to vector<64x32xf32>
    %21 = arith.mulf %20, %19 : vector<64x32xf32>
    %22 = arith.addf %17, %21 : vector<64x32xf32>
    %c0_16 = arith.constant 0 : index
    %c0_17 = arith.constant 0 : index
    %23 = vector.load %arg7[%c0_16, %c0_17] : memref<64x32xf32, #tpu.memory_space<vmem>>, vector<64x32xf32>
    tpu.vector_store %arg7[%c0_16, %c0_17], %22 {strides = array<i32>} : memref<64x32xf32, #tpu.memory_space<vmem>>, vector<64x32xf32>,
    return
  }
  func.func @transform_0(%arg0: i32) -> (i32, i32) {
    %c0_i32 = arith.constant 0 : i32
    %c0_i32_0 = arith.constant 0 : i32
    return %arg0, %c0_i32 : i32, i32
  }
  func.func @transform_1(%arg0: i32) -> (i32, i32) {
    %c0_i32 = arith.constant 0 : i32
    %c0_i32_0 = arith.constant 0 : i32
    return %arg0, %c0_i32 : i32, i32
  }
  func.func @transform_2(%arg0: i32) -> (i32, i32) {
    %c0_i32 = arith.constant 0 : i32
    %c0_i32_0 = arith.constant 0 : i32
    %c0_i32_1 = arith.constant 0 : i32
    return %c0_i32, %c0_i32_0 : i32, i32
  }
  func.func @transform_3(%arg0: i32) -> (i32, i32) {
    %c0_i32 = arith.constant 0 : i32
    %c0_i32_0 = arith.constant 0 : i32
    %c0_i32_1 = arith.constant 0 : i32
    return %c0_i32, %c0_i32_0 : i32, i32
  }
  func.func @transform_4(%arg0: i32) -> (i32, i32) {
    %c0_i32 = arith.constant 0 : i32
    %c0_i32_0 = arith.constant 0 : i32
    %c0_i32_1 = arith.constant 0 : i32
    return %c0_i32, %c0_i32_0 : i32, i32
  }
  func.func @transform_5(%arg0: i32) -> (i32, i32) {
    %c0_i32 = arith.constant 0 : i32
    %c0_i32_0 = arith.constant 0 : i32
    %c0_i32_1 = arith.constant 0 : i32
    return %c0_i32, %c0_i32_0 : i32, i32
  }
  func.func @transform_6(%arg0: i32) -> (i32, i32) {
    %c0_i32 = arith.constant 0 : i32
    %c0_i32_0 = arith.constant 0 : i32
    return %arg0, %c0_i32 : i32, i32
  }
}

</mosaic_0001>

<llo_original>
// kernel: tpu_custom_call.1
$region0: #{tpu_custom_call.1}
  #allocation0 [shape = 'u32[]', space=smem, size = 0x4, offset = 0x4, fixed_abs, tag = 'smem constant byte address 0x4 - core index']
  #allocation1 [shape = 'u32[144,128]{1,0:T(1,128)}', space=vmem, size = 0x12000, scoped, tag = 'internal scratch']
  %s0 = inlined_call_operand.vmem [shape: f32[128,16], index: 0, kind: input, shape index: {}]
  %s1 = inlined_call_operand.vmem [shape: f32[64,32], index: 1, kind: input, shape index: {}]
  %s2 = inlined_call_operand.vmem [shape: f32[16,8], index: 2, kind: input, shape index: {}]
  %s3 = inlined_call_operand.vmem [shape: f32[16,16], index: 3, kind: input, shape index: {}]
  %s4 = inlined_call_operand.vmem [shape: f32[8,32], index: 4, kind: input, shape index: {}]
  %s5 = inlined_call_operand.vmem [shape: f32[1,32], index: 5, kind: input, shape index: {}]
  %s6 = inlined_call_operand.vmem [shape: f32[64,32], index: 6, kind: output, shape index: {}]
  %s7 = sld [smem:[#allocation0]]
  $region34: #{tpu_custom_call.1} parent=0
    _
  %s9 = ssub.s32 1, %s7
  %s10 = scalar_select 0, %s9, %s7
  // Predicated region
  $region2: #{tpu_custom_call.1} parent=0 // pred_check
    _
  $region3: #{tpu_custom_call.1} parent=0 // pred_check_branch
    %12 = sbr.rel (0) target = $region5
  $region4: #{tpu_custom_call.1} parent=0 // pred_region
    _
  $region5: #{tpu_custom_call.1} parent=0 // pred_fallthru
    _
  // Predicated region
  $region6: #{tpu_custom_call.1} parent=0 // pred_check
    _
  $region7: #{tpu_custom_call.1} parent=0 // pred_check_branch
    %14 = sbr.rel (0) target = $region9
  $region8: #{tpu_custom_call.1} parent=0 // pred_region
    _
  $region9: #{tpu_custom_call.1} parent=0 // pred_fallthru
    _
  // Predicated region
  $region10: #{tpu_custom_call.1} parent=0 // pred_check
    _
  $region11: #{tpu_custom_call.1} parent=0 // pred_check_branch
    %16 = sbr.rel (0) target = $region13
  $region12: #{tpu_custom_call.1} parent=0 // pred_region
    _
  $region13: #{tpu_custom_call.1} parent=0 // pred_fallthru
    _
  // Predicated region
  $region14: #{tpu_custom_call.1} parent=0 // pred_check
    _
  $region15: #{tpu_custom_call.1} parent=0 // pred_check_branch
    %18 = sbr.rel (0) target = $region17
  $region16: #{tpu_custom_call.1} parent=0 // pred_region
    _
  $region17: #{tpu_custom_call.1} parent=0 // pred_fallthru
    _
  // Predicated region
  $region18: #{tpu_custom_call.1} parent=0 // pred_check
    _
  $region19: #{tpu_custom_call.1} parent=0 // pred_check_branch
    %20 = sbr.rel (0) target = $region21
  $region20: #{tpu_custom_call.1} parent=0 // pred_region
    _
  $region21: #{tpu_custom_call.1} parent=0 // pred_fallthru
    _
  // Predicated region
  $region22: #{tpu_custom_call.1} parent=0 // pred_check
    _
  $region23: #{tpu_custom_call.1} parent=0 // pred_check_branch
    %22 = sbr.rel (0) target = $region25
  $region24: #{tpu_custom_call.1} parent=0 // pred_region
    _
  $region25: #{tpu_custom_call.1} parent=0 // pred_fallthru
    _
  %v23 = vld [vmem:[%s0] ss:$2 sm:$0xff]
  %s24 = scalar_lea.vmem %s0, 16
  %v25 = vld [vmem:[%s24] ss:$2 sm:$0xff]
  %s26 = scalar_lea.vmem %s0, 32
  %v27 = vld [vmem:[%s26] ss:$2 sm:$0xff]
  %s28 = scalar_lea.vmem %s0, 48
  %v29 = vld [vmem:[%s28] ss:$2 sm:$0xff]
  %s30 = scalar_lea.vmem %s0, 64
  %v31 = vld [vmem:[%s30] ss:$2 sm:$0xff]
  %s32 = scalar_lea.vmem %s0, 80
  %v33 = vld [vmem:[%s32] ss:$2 sm:$0xff]
  %s34 = scalar_lea.vmem %s0, 96
  %v35 = vld [vmem:[%s34] ss:$2 sm:$0xff]
  %s36 = scalar_lea.vmem %s0, 112
  %v37 = vld [vmem:[%s36] ss:$2 sm:$0xff]
  %s38 = scalar_lea.vmem %s0, 1
  %v39 = vld [vmem:[%s38] ss:$2 sm:$0xff]
  %s40 = scalar_lea.vmem %s0, 17
  %v41 = vld [vmem:[%s40] ss:$2 sm:$0xff]
  %s42 = scalar_lea.vmem %s0, 33
  %v43 = vld [vmem:[%s42] ss:$2 sm:$0xff]
  %s44 = scalar_lea.vmem %s0, 49
  %v45 = vld [vmem:[%s44] ss:$2 sm:$0xff]
  %s46 = scalar_lea.vmem %s0, 65
  %v47 = vld [vmem:[%s46] ss:$2 sm:$0xff]
  %s48 = scalar_lea.vmem %s0, 81
  %v49 = vld [vmem:[%s48] ss:$2 sm:$0xff]
  %s50 = scalar_lea.vmem %s0, 97
  %v51 = vld [vmem:[%s50] ss:$2 sm:$0xff]
  %s52 = scalar_lea.vmem %s0, 113
  %v53 = vld [vmem:[%s52] ss:$2 sm:$0xff]
  %v54 = vadd.f32 %v23, %v39
  %v55 = vadd.f32 %v25, %v41
  %v56 = vadd.f32 %v27, %v43
  %v57 = vadd.f32 %v29, %v45
  %v58 = vadd.f32 %v31, %v47
  %v59 = vadd.f32 %v33, %v49
  %v60 = vadd.f32 %v35, %v51
  %v61 = vadd.f32 %v37, %v53
  %v62 = vmax.f32 %v23, %v39
  %v63 = vmax.f32 %v25, %v41
  %v64 = vmax.f32 %v27, %v43
  %v65 = vmax.f32 %v29, %v45
  %v66 = vmax.f32 %v31, %v47
  %v67 = vmax.f32 %v33, %v49
  %v68 = vmax.f32 %v35, %v51
  %v69 = vmax.f32 %v37, %v53
  %v70 = vld [vmem:[%s2] sm:$0xff]
  %v71 = vld [vmem:[%s2 + $0x8] sm:$0xff]
  %vm72 = vcmask 130048
  %v74 = vsel %vm72, %v54, 0
  %v77 = vsel %vm72, %v55, 0
  %v80 = vsel %vm72, %v56, 0
  %v83 = vsel %vm72, %v57, 0
  %v86 = vsel %vm72, %v58, 0
  %v89 = vsel %vm72, %v59, 0
  %v92 = vsel %vm72, %v60, 0
  %v95 = vsel %vm72, %v61, 0
  %97 = vmatprep.subr.mxu0 0.0
  %v98 = vand.u32 %v70, 4294901760
  %99 = vmatpush1.msra.mxu0 %v98
  %100 = vmatprep.subr.mxu0 0.0
  %v101 = vand.u32 %v71, 4294901760
  %102 = vmatpush1.msra.mxu0 %v101
  %103 = vmatprep.subr.mxu0 0.0
  %104 = vmatpush1.msra.mxu0 0.0
  %105 = vmatprep.subr.mxu0 0.0
  %106 = vmatpush1.msra.mxu0 0.0
  %107 = vmatprep.subr.mxu0 0.0
  %108 = vmatpush1.msra.mxu0 0.0
  %109 = vmatprep.subr.mxu0 0.0
  %110 = vmatpush1.msra.mxu0 0.0
  %111 = vmatprep.subr.mxu0 0.0
  %112 = vmatpush1.msra.mxu0 0.0
  %113 = vmatprep.subr.mxu0 0.0
  %114 = vmatpush1.msra.mxu0 0.0
  %115 = vmatprep.subr.mxu0 0.0
  %116 = vmatpush1.msra.mxu0 0.0
  %117 = vmatprep.subr.mxu0 0.0
  %118 = vmatpush1.msra.mxu0 0.0
  %119 = vmatprep.subr.mxu0 0.0
  %120 = vmatpush1.msra.mxu0 0.0
  %121 = vmatprep.subr.mxu0 0.0
  %122 = vmatpush1.msra.mxu0 0.0
  %123 = vmatprep.subr.mxu0 0.0
  %124 = vmatpush1.msra.mxu0 0.0
  %125 = vmatprep.subr.mxu0 0.0
  %126 = vmatpush1.msra.mxu0 0.0
  %127 = vmatprep.subr.mxu0 0.0
  %128 = vmatpush1.msra.mxu0 0.0
  %129 = vmatprep.subr.mxu0 0.0
  %130 = vmatpush1.msra.mxu0 0.0
  %131 = vmatprep.subr.mxu0 0.0
  %132 = vmatpush1.msra.mxu0 0.0
  %133 = vmatprep.subr.mxu0 0.0
  %134 = vmatpush1.msra.mxu0 0.0
  %135 = vmatprep.subr.mxu0 0.0
  %136 = vmatpush1.msra.mxu0 0.0
  %137 = vmatprep.subr.mxu0 0.0
  %138 = vmatpush1.msra.mxu0 0.0
  %139 = vmatprep.subr.mxu0 0.0
  %140 = vmatpush1.msra.mxu0 0.0
  %141 = vmatprep.subr.mxu0 0.0
  %142 = vmatpush1.msra.mxu0 0.0
  %143 = vmatprep.subr.mxu0 0.0
  %144 = vmatpush1.msra.mxu0 0.0
  %145 = vmatprep.subr.mxu0 0.0
  %146 = vmatpush1.msra.mxu0 0.0
  %147 = vmatprep.subr.mxu0 0.0
  %148 = vmatpush1.msra.mxu0 0.0
  %149 = vmatprep.subr.mxu0 0.0
  %150 = vmatpush1.msra.mxu0 0.0
  %151 = vmatprep.subr.mxu0 0.0
  %152 = vmatpush1.msra.mxu0 0.0
  %153 = vmatprep.subr.mxu0 0.0
  %154 = vmatpush1.msra.mxu0 0.0
  %155 = vmatprep.subr.mxu0 0.0
  %156 = vmatpush1.msra.mxu0 0.0
  %157 = vmatprep.subr.mxu0 0.0
  %158 = vmatpush1.msra.mxu0 0.0
  %159 = vmatprep.subr.mxu0 0.0
  %160 = vmatpush1.msra.mxu0 0.0
  %161 = vmatprep.subr.mxu0 0.0
  %162 = vmatpush1.msra.mxu0 0.0
  %163 = vmatprep.mubr.f32.mxu0 0.0
  %v164 = vand.u32 %v74, 4294901760
  %v165 = vsub.f32 %v74, %v164
  %v166 = vand.u32 %v165, 4294901760
  %v167 = vsub.f32 %v165, %v166
  %v168 = vand.u32 %v167, 4294901760
  %169 = vmatmul.mubr.f32.gmra.mrb[0].mxu0 %v168
  %v170 = vpop.f32.mrb[0].mxu0
  %v171 = vadd.f32 0.0, %v170
  %v172 = vpop.f32.mrb[0].mxu0
  %173 = vmatprep.mubr.f32.mxu0 0.0
  %v174 = vand.u32 %v77, 4294901760
  %v175 = vsub.f32 %v77, %v174
  %v176 = vand.u32 %v175, 4294901760
  %v177 = vsub.f32 %v175, %v176
  %v178 = vand.u32 %v177, 4294901760
  %179 = vmatmul.mubr.f32.gmra.mrb[0].mxu0 %v178
  %v180 = vpop.f32.mrb[0].mxu0
  %v181 = vadd.f32 0.0, %v180
  %v182 = vpop.f32.mrb[0].mxu0
  %183 = vmatprep.mubr.f32.mxu0 0.0
  %v184 = vand.u32 %v80, 4294901760
  %v185 = vsub.f32 %v80, %v184
  %v186 = vand.u32 %v185, 4294901760
  %v187 = vsub.f32 %v185, %v186
  %v188 = vand.u32 %v187, 4294901760
  %189 = vmatmul.mubr.f32.gmra.mrb[0].mxu0 %v188
  %v190 = vpop.f32.mrb[0].mxu0
  %v191 = vadd.f32 0.0, %v190
  %v192 = vpop.f32.mrb[0].mxu0
  %193 = vmatprep.mubr.f32.mxu0 0.0
  %v194 = vand.u32 %v83, 4294901760
  %v195 = vsub.f32 %v83, %v194
  %v196 = vand.u32 %v195, 4294901760
  %v197 = vsub.f32 %v195, %v196
  %v198 = vand.u32 %v197, 4294901760
  %199 = vmatmul.mubr.f32.gmra.mrb[0].mxu0 %v198
  %v200 = vpop.f32.mrb[0].mxu0
  %v201 = vadd.f32 0.0, %v200
  %v202 = vpop.f32.mrb[0].mxu0
  %203 = vmatprep.mubr.f32.mxu0 0.0
  %v204 = vand.u32 %v86, 4294901760
  %v205 = vsub.f32 %v86, %v204
  %v206 = vand.u32 %v205, 4294901760
  %v207 = vsub.f32 %v205, %v206
  %v208 = vand.u32 %v207, 4294901760
  %209 = vmatmul.mubr.f32.gmra.mrb[0].mxu0 %v208
  %v210 = vpop.f32.mrb[0].mxu0
  %v211 = vadd.f32 0.0, %v210
  %v212 = vpop.f32.mrb[0].mxu0
  %213 = vmatprep.mubr.f32.mxu0 0.0
  %v214 = vand.u32 %v89, 4294901760
  %v215 = vsub.f32 %v89, %v214
  %v216 = vand.u32 %v215, 4294901760
  %v217 = vsub.f32 %v215, %v216
  %v218 = vand.u32 %v217, 4294901760
  %219 = vmatmul.mubr.f32.gmra.mrb[0].mxu0 %v218
  %v220 = vpop.f32.mrb[0].mxu0
  %v221 = vadd.f32 0.0, %v220
  %v222 = vpop.f32.mrb[0].mxu0
  %223 = vmatprep.mubr.f32.mxu0 0.0
  %v224 = vand.u32 %v92, 4294901760
  %v225 = vsub.f32 %v92, %v224
  %v226 = vand.u32 %v225, 4294901760
  %v227 = vsub.f32 %v225, %v226
  %v228 = vand.u32 %v227, 4294901760
  %229 = vmatmul.mubr.f32.gmra.mrb[0].mxu0 %v228
  %v230 = vpop.f32.mrb[0].mxu0
  %v231 = vadd.f32 0.0, %v230
  %v232 = vpop.f32.mrb[0].mxu0
  %233 = vmatprep.mubr.f32.mxu0 0.0
  %v234 = vand.u32 %v95, 4294901760
  %v235 = vsub.f32 %v95, %v234
  %v236 = vand.u32 %v235, 4294901760
  %v237 = vsub.f32 %v235, %v236
  %v238 = vand.u32 %v237, 4294901760
  %239 = vmatmul.mubr.f32.gmra.mrb[0].mxu0 %v238
  %v240 = vpop.f32.mrb[0].mxu0
  %v241 = vadd.f32 0.0, %v240
  %v242 = vpop.f32.mrb[0].mxu0
  %243 = vdwg.mxu0
  %244 = vmatprep.subr.mxu0 0.0
  %v245 = vand.u32 %v70, 4294901760
  %v246 = vsub.f32 %v70, %v245
  %v247 = vand.u32 %v246, 4294901760
  %v248 = vsub.f32 %v246, %v247
  %v249 = vand.u32 %v248, 4294901760
  %250 = vmatpush1.msra.mxu0 %v249
  %251 = vmatprep.subr.mxu0 0.0
  %v252 = vand.u32 %v71, 4294901760
  %v253 = vsub.f32 %v71, %v252
  %v254 = vand.u32 %v253, 4294901760
  %v255 = vsub.f32 %v253, %v254
  %v256 = vand.u32 %v255, 4294901760
  %257 = vmatpush1.msra.mxu0 %v256
  %258 = vmatprep.subr.mxu0 0.0
  %259 = vmatpush1.msra.mxu0 0.0
  %260 = vmatprep.subr.mxu0 0.0
  %261 = vmatpush1.msra.mxu0 0.0
  %262 = vmatprep.subr.mxu0 0.0
  %263 = vmatpush1.msra.mxu0 0.0
  %264 = vmatprep.subr.mxu0 0.0
  %265 = vmatpush1.msra.mxu0 0.0
  %266 = vmatprep.subr.mxu0 0.0
  %267 = vmatpush1.msra.mxu0 0.0
  %268 = vmatprep.subr.mxu0 0.0
  %269 = vmatpush1.msra.mxu0 0.0
  %270 = vmatprep.subr.mxu0 0.0
  %271 = vmatpush1.msra.mxu0 0.0
  %272 = vmatprep.subr.mxu0 0.0
  %273 = vmatpush1.msra.mxu0 0.0
  %274 = vmatprep.subr.mxu0 0.0
  %275 = vmatpush1.msra.mxu0 0.0
  %276 = vmatprep.subr.mxu0 0.0
  %277 = vmatpush1.msra.mxu0 0.0
  %278 = vmatprep.subr.mxu0 0.0
  %279 = vmatpush1.msra.mxu0 0.0
  %280 = vmatprep.subr.mxu0 0.0
  %281 = vmatpush1.msra.mxu0 0.0
  %282 = vmatprep.subr.mxu0 0.0
  %283 = vmatpush1.msra.mxu0 0.0
  %284 = vmatprep.subr.mxu0 0.0
  %285 = vmatpush1.msra.mxu0 0.0
  %286 = vmatprep.subr.mxu0 0.0
  %287 = vmatpush1.msra.mxu0 0.0
  %288 = vmatprep.subr.mxu0 0.0
  %289 = vmatpush1.msra.mxu0 0.0
  %290 = vmatprep.subr.mxu0 0.0
  %291 = vmatpush1.msra.mxu0 0.0
  %292 = vmatprep.subr.mxu0 0.0
  %293 = vmatpush1.msra.mxu0 0.0
  %294 = vmatprep.subr.mxu0 0.0
  %295 = vmatpush1.msra.mxu0 0.0
  %296 = vmatprep.subr.mxu0 0.0
  %297 = vmatpush1.msra.mxu0 0.0
  %298 = vmatprep.subr.mxu0 0.0
  %299 = vmatpush1.msra.mxu0 0.0
  %300 = vmatprep.subr.mxu0 0.0
  %301 = vmatpush1.msra.mxu0 0.0
  %302 = vmatprep.subr.mxu0 0.0
  %303 = vmatpush1.msra.mxu0 0.0
  %304 = vmatprep.subr.mxu0 0.0
  %305 = vmatpush1.msra.mxu0 0.0
  %306 = vmatprep.subr.mxu0 0.0
  %307 = vmatpush1.msra.mxu0 0.0
  %308 = vmatprep.subr.mxu0 0.0
  %309 = vmatpush1.msra.mxu0 0.0
  %310 = vmatprep.subr.mxu0 0.0
  %311 = vmatpush1.msra.mxu0 0.0
  %312 = vmatprep.subr.mxu0 0.0
  %313 = vmatpush1.msra.mxu0 0.0
  %314 = vmatprep.subr.mxu0 0.0
  %315 = vmatpush1.msra.mxu0 0.0
  %316 = vmatprep.subr.mxu0 0.0
  %317 = vmatpush1.msra.mxu0 0.0
  %318 = vmatprep.mubr.f32.mxu0 0.0
  %v319 = vand.u32 %v74, 4294901760
  %320 = vmatmul.mubr.f32.gmra.mrb[0].mxu0 %v319
  %v321 = vpop.f32.mrb[0].mxu0
  %v322 = vadd.f32 %v171, %v321
  %v323 = vpop.f32.mrb[0].mxu0
  %324 = vmatprep.mubr.f32.mxu0 0.0
  %v325 = vand.u32 %v77, 4294901760
  %326 = vmatmul.mubr.f32.gmra.mrb[0].mxu0 %v325
  %v327 = vpop.f32.mrb[0].mxu0
  %v328 = vadd.f32 %v181, %v327
  %v329 = vpop.f32.mrb[0].mxu0
  %330 = vmatprep.mubr.f32.mxu0 0.0
  %v331 = vand.u32 %v80, 4294901760
  %332 = vmatmul.mubr.f32.gmra.mrb[0].mxu0 %v331
  %v333 = vpop.f32.mrb[0].mxu0
  %v334 = vadd.f32 %v191, %v333
  %v335 = vpop.f32.mrb[0].mxu0
  %336 = vmatprep.mubr.f32.mxu0 0.0
  %v337 = vand.u32 %v83, 4294901760
  %338 = vmatmul.mubr.f32.gmra.mrb[0].mxu0 %v337
  %v339 = vpop.f32.mrb[0].mxu0
  %v340 = vadd.f32 %v201, %v339
  %v341 = vpop.f32.mrb[0].mxu0
  %342 = vmatprep.mubr.f32.mxu0 0.0
  %v343 = vand.u32 %v86, 4294901760
  %344 = vmatmul.mubr.f32.gmra.mrb[0].mxu0 %v343
  %v345 = vpop.f32.mrb[0].mxu0
  %v346 = vadd.f32 %v211, %v345
  %v347 = vpop.f32.mrb[0].mxu0
  %348 = vmatprep.mubr.f32.mxu0 0.0
  %v349 = vand.u32 %v89, 4294901760
  %350 = vmatmul.mubr.f32.gmra.mrb[0].mxu0 %v349
  %v351 = vpop.f32.mrb[0].mxu0
  %v352 = vadd.f32 %v221, %v351
  %v353 = vpop.f32.mrb[0].mxu0
  %354 = vmatprep.mubr.f32.mxu0 0.0
  %v355 = vand.u32 %v92, 4294901760
  %356 = vmatmul.mubr.f32.gmra.mrb[0].mxu0 %v355
  %v357 = vpop.f32.mrb[0].mxu0
  %v358 = vadd.f32 %v231, %v357
  %v359 = vpop.f32.mrb[0].mxu0
  %360 = vmatprep.mubr.f32.mxu0 0.0
  %v361 = vand.u32 %v95, 4294901760
  %362 = vmatmul.mubr.f32.gmra.mrb[0].mxu0 %v361
  %v363 = vpop.f32.mrb[0].mxu0
  %v364 = vadd.f32 %v241, %v363
  %v365 = vpop.f32.mrb[0].mxu0
  %366 = vdwg.mxu0
  %367 = vmatprep.subr.mxu0 0.0
  %v368 = vand.u32 %v70, 4294901760
  %v369 = vsub.f32 %v70, %v368
  %370 = vmatpush1.msra.mxu0 %v369
  %371 = vmatprep.subr.mxu0 0.0
  %v372 = vand.u32 %v71, 4294901760
  %v373 = vsub.f32 %v71, %v372
  %374 = vmatpush1.msra.mxu0 %v373
  %375 = vmatprep.subr.mxu0 0.0
  %376 = vmatpush1.msra.mxu0 0.0
  %377 = vmatprep.subr.mxu0 0.0
  %378 = vmatpush1.msra.mxu0 0.0
  %379 = vmatprep.subr.mxu0 0.0
  %380 = vmatpush1.msra.mxu0 0.0
  %381 = vmatprep.subr.mxu0 0.0
  %382 = vmatpush1.msra.mxu0 0.0
  %383 = vmatprep.subr.mxu0 0.0
  %384 = vmatpush1.msra.mxu0 0.0
  %385 = vmatprep.subr.mxu0 0.0
  %386 = vmatpush1.msra.mxu0 0.0
  %387 = vmatprep.subr.mxu0 0.0
  %388 = vmatpush1.msra.mxu0 0.0
  %389 = vmatprep.subr.mxu0 0.0
  %390 = vmatpush1.msra.mxu0 0.0
  %391 = vmatprep.subr.mxu0 0.0
  %392 = vmatpush1.msra.mxu0 0.0
  %393 = vmatprep.subr.mxu0 0.0
  %394 = vmatpush1.msra.mxu0 0.0
  %395 = vmatprep.subr.mxu0 0.0
  %396 = vmatpush1.msra.mxu0 0.0
  %397 = vmatprep.subr.mxu0 0.0
  %398 = vmatpush1.msra.mxu0 0.0
  %399 = vmatprep.subr.mxu0 0.0
  %400 = vmatpush1.msra.mxu0 0.0
  %401 = vmatprep.subr.mxu0 0.0
  %402 = vmatpush1.msra.mxu0 0.0
  %403 = vmatprep.subr.mxu0 0.0
  %404 = vmatpush1.msra.mxu0 0.0
  %405 = vmatprep.subr.mxu0 0.0
  %406 = vmatpush1.msra.mxu0 0.0
  %407 = vmatprep.subr.mxu0 0.0
  %408 = vmatpush1.msra.mxu0 0.0
  %409 = vmatprep.subr.mxu0 0.0
  %410 = vmatpush1.msra.mxu0 0.0
  %411 = vmatprep.subr.mxu0 0.0
  %412 = vmatpush1.msra.mxu0 0.0
  %413 = vmatprep.subr.mxu0 0.0
  %414 = vmatpush1.msra.mxu0 0.0
  %415 = vmatprep.subr.mxu0 0.0
  %416 = vmatpush1.msra.mxu0 0.0
  %417 = vmatprep.subr.mxu0 0.0
  %418 = vmatpush1.msra.mxu0 0.0
  %419 = vmatprep.subr.mxu0 0.0
  %420 = vmatpush1.msra.mxu0 0.0
  %421 = vmatprep.subr.mxu0 0.0
  %422 = vmatpush1.msra.mxu0 0.0
  %423 = vmatprep.subr.mxu0 0.0
  %424 = vmatpush1.msra.mxu0 0.0
  %425 = vmatprep.subr.mxu0 0.0
  %426 = vmatpush1.msra.mxu0 0.0
  %427 = vmatprep.subr.mxu0 0.0
  %428 = vmatpush1.msra.mxu0 0.0
  %429 = vmatprep.subr.mxu0 0.0
  %430 = vmatpush1.msra.mxu0 0.0
  %431 = vmatprep.subr.mxu0 0.0
  %432 = vmatpush1.msra.mxu0 0.0
  %433 = vmatprep.subr.mxu0 0.0
  %434 = vmatpush1.msra.mxu0 0.0
  %435 = vmatprep.mubr.f32.mxu0 0.0
  %v436 = vand.u32 %v74, 4294901760
  %v437 = vsub.f32 %v74, %v436
  %438 = vmatmul.mubr.f32.gmra.mrb[0].mxu0 %v437
  %v439 = vpop.f32.mrb[0].mxu0
  %v440 = vadd.f32 %v322, %v439
  %v441 = vpop.f32.mrb[0].mxu0
  %442 = vmatprep.mubr.f32.mxu0 0.0
  %v443 = vand.u32 %v77, 4294901760
  %v444 = vsub.f32 %v77, %v443
  %445 = vmatmul.mubr.f32.gmra.mrb[0].mxu0 %v444
  %v446 = vpop.f32.mrb[0].mxu0
  %v447 = vadd.f32 %v328, %v446
  %v448 = vpop.f32.mrb[0].mxu0
  %449 = vmatprep.mubr.f32.mxu0 0.0
  %v450 = vand.u32 %v80, 4294901760
  %v451 = vsub.f32 %v80, %v450
  %452 = vmatmul.mubr.f32.gmra.mrb[0].mxu0 %v451
  %v453 = vpop.f32.mrb[0].mxu0
  %v454 = vadd.f32 %v334, %v453
  %v455 = vpop.f32.mrb[0].mxu0
  %456 = vmatprep.mubr.f32.mxu0 0.0
  %v457 = vand.u32 %v83, 4294901760
  %v458 = vsub.f32 %v83, %v457
  %459 = vmatmul.mubr.f32.gmra.mrb[0].mxu0 %v458
  %v460 = vpop.f32.mrb[0].mxu0
  %v461 = vadd.f32 %v340, %v460
  %v462 = vpop.f32.mrb[0].mxu0
  %463 = vmatprep.mubr.f32.mxu0 0.0
  %v464 = vand.u32 %v86, 4294901760
  %v465 = vsub.f32 %v86, %v464
  %466 = vmatmul.mubr.f32.gmra.mrb[0].mxu0 %v465
  %v467 = vpop.f32.mrb[0].mxu0
  %v468 = vadd.f32 %v346, %v467
  %v469 = vpop.f32.mrb[0].mxu0
  %470 = vmatprep.mubr.f32.mxu0 0.0
  %v471 = vand.u32 %v89, 4294901760
  %v472 = vsub.f32 %v89, %v471
  %473 = vmatmul.mubr.f32.gmra.mrb[0].mxu0 %v472
  %v474 = vpop.f32.mrb[0].mxu0
  %v475 = vadd.f32 %v352, %v474
  %v476 = vpop.f32.mrb[0].mxu0
  %477 = vmatprep.mubr.f32.mxu0 0.0
  %v478 = vand.u32 %v92, 4294901760
  %v479 = vsub.f32 %v92, %v478
  %480 = vmatmul.mubr.f32.gmra.mrb[0].mxu0 %v479
  %v481 = vpop.f32.mrb[0].mxu0
  %v482 = vadd.f32 %v358, %v481
  %v483 = vpop.f32.mrb[0].mxu0
  %484 = vmatprep.mubr.f32.mxu0 0.0
  %v485 = vand.u32 %v95, 4294901760
  %v486 = vsub.f32 %v95, %v485
  %487 = vmatmul.mubr.f32.gmra.mrb[0].mxu0 %v486
  %v488 = vpop.f32.mrb[0].mxu0
  %v489 = vadd.f32 %v364, %v488
  %v490 = vpop.f32.mrb[0].mxu0
  %491 = vdwg.mxu0
  %492 = vmatprep.subr.mxu0 0.0
  %v493 = vand.u32 %v70, 4294901760
  %494 = vmatpush1.msra.mxu0 %v493
  %495 = vmatprep.subr.mxu0 0.0
  %v496 = vand.u32 %v71, 4294901760
  %497 = vmatpush1.msra.mxu0 %v496
  %498 = vmatprep.subr.mxu0 0.0
  %499 = vmatpush1.msra.mxu0 0.0
  %500 = vmatprep.subr.mxu0 0.0
  %501 = vmatpush1.msra.mxu0 0.0
  %502 = vmatprep.subr.mxu0 0.0
  %503 = vmatpush1.msra.mxu0 0.0
  %504 = vmatprep.subr.mxu0 0.0
  %505 = vmatpush1.msra.mxu0 0.0
  %506 = vmatprep.subr.mxu0 0.0
  %507 = vmatpush1.msra.mxu0 0.0
  %508 = vmatprep.subr.mxu0 0.0
  %509 = vmatpush1.msra.mxu0 0.0
  %510 = vmatprep.subr.mxu0 0.0
  %511 = vmatpush1.msra.mxu0 0.0
  %512 = vmatprep.subr.mxu0 0.0
  %513 = vmatpush1.msra.mxu0 0.0
  %514 = vmatprep.subr.mxu0 0.0
  %515 = vmatpush1.msra.mxu0 0.0
  %516 = vmatprep.subr.mxu0 0.0
  %517 = vmatpush1.msra.mxu0 0.0
  %518 = vmatprep.subr.mxu0 0.0
  %519 = vmatpush1.msra.mxu0 0.0
  %520 = vmatprep.subr.mxu0 0.0
  %521 = vmatpush1.msra.mxu0 0.0
  %522 = vmatprep.subr.mxu0 0.0
  %523 = vmatpush1.msra.mxu0 0.0
  %524 = vmatprep.subr.mxu0 0.0
  %525 = vmatpush1.msra.mxu0 0.0
  %526 = vmatprep.subr.mxu0 0.0
  %527 = vmatpush1.msra.mxu0 0.0
  %528 = vmatprep.subr.mxu0 0.0
  %529 = vmatpush1.msra.mxu0 0.0
  %530 = vmatprep.subr.mxu0 0.0
  %531 = vmatpush1.msra.mxu0 0.0
  %532 = vmatprep.subr.mxu0 0.0
  %533 = vmatpush1.msra.mxu0 0.0
  %534 = vmatprep.subr.mxu0 0.0
  %535 = vmatpush1.msra.mxu0 0.0
  %536 = vmatprep.subr.mxu0 0.0
  %537 = vmatpush1.msra.mxu0 0.0
  %538 = vmatprep.subr.mxu0 0.0
  %539 = vmatpush1.msra.mxu0 0.0
  %540 = vmatprep.subr.mxu0 0.0
  %541 = vmatpush1.msra.mxu0 0.0
  %542 = vmatprep.subr.mxu0 0.0
  %543 = vmatpush1.msra.mxu0 0.0
  %544 = vmatprep.subr.mxu0 0.0
  %545 = vmatpush1.msra.mxu0 0.0
  %546 = vmatprep.subr.mxu0 0.0
  %547 = vmatpush1.msra.mxu0 0.0
  %548 = vmatprep.subr.mxu0 0.0
  %549 = vmatpush1.msra.mxu0 0.0
  %550 = vmatprep.subr.mxu0 0.0
  %551 = vmatpush1.msra.mxu0 0.0
  %552 = vmatprep.subr.mxu0 0.0
  %553 = vmatpush1.msra.mxu0 0.0
  %554 = vmatprep.subr.mxu0 0.0
  %555 = vmatpush1.msra.mxu0 0.0
  %556 = vmatprep.subr.mxu0 0.0
  %557 = vmatpush1.msra.mxu0 0.0
  %558 = vmatprep.mubr.f32.mxu0 0.0
  %v559 = vand.u32 %v74, 4294901760
  %v560 = vsub.f32 %v74, %v559
  %v561 = vand.u32 %v560, 4294901760
  %562 = vmatmul.mubr.f32.gmra.mrb[0].mxu0 %v561
  %v563 = vpop.f32.mrb[0].mxu0
  %v564 = vadd.f32 %v440, %v563
  %v565 = vpop.f32.mrb[0].mxu0
  %566 = vmatprep.mubr.f32.mxu0 0.0
  %v567 = vand.u32 %v77, 4294901760
  %v568 = vsub.f32 %v77, %v567
  %v569 = vand.u32 %v568, 4294901760
  %570 = vmatmul.mubr.f32.gmra.mrb[0].mxu0 %v569
  %v571 = vpop.f32.mrb[0].mxu0
  %v572 = vadd.f32 %v447, %v571
  %v573 = vpop.f32.mrb[0].mxu0
  %574 = vmatprep.mubr.f32.mxu0 0.0
  %v575 = vand.u32 %v80, 4294901760
  %v576 = vsub.f32 %v80, %v575
  %v577 = vand.u32 %v576, 4294901760
  %578 = vmatmul.mubr.f32.gmra.mrb[0].mxu0 %v577
  %v579 = vpop.f32.mrb[0].mxu0
  %v580 = vadd.f32 %v454, %v579
  %v581 = vpop.f32.mrb[0].mxu0
  %582 = vmatprep.mubr.f32.mxu0 0.0
  %v583 = vand.u32 %v83, 4294901760
  %v584 = vsub.f32 %v83, %v583
  %v585 = vand.u32 %v584, 4294901760
  %586 = vmatmul.mubr.f32.gmra.mrb[0].mxu0 %v585
  %v587 = vpop.f32.mrb[0].mxu0
  %v588 = vadd.f32 %v461, %v587
  %v589 = vpop.f32.mrb[0].mxu0
  %590 = vmatprep.mubr.f32.mxu0 0.0
  %v591 = vand.u32 %v86, 4294901760
  %v592 = vsub.f32 %v86, %v591
  %v593 = vand.u32 %v592, 4294901760
  %594 = vmatmul.mubr.f32.gmra.mrb[0].mxu0 %v593
  %v595 = vpop.f32.mrb[0].mxu0
  %v596 = vadd.f32 %v468, %v595
  %v597 = vpop.f32.mrb[0].mxu0
  %598 = vmatprep.mubr.f32.mxu0 0.0
  %v599 = vand.u32 %v89, 4294901760
  %v600 = vsub.f32 %v89, %v599
  %v601 = vand.u32 %v600, 4294901760
  %602 = vmatmul.mubr.f32.gmra.mrb[0].mxu0 %v601
  %v603 = vpop.f32.mrb[0].mxu0
  %v604 = vadd.f32 %v475, %v603
  %v605 = vpop.f32.mrb[0].mxu0
  %606 = vmatprep.mubr.f32.mxu0 0.0
  %v607 = vand.u32 %v92, 4294901760
  %v608 = vsub.f32 %v92, %v607
  %v609 = vand.u32 %v608, 4294901760
  %610 = vmatmul.mubr.f32.gmra.mrb[0].mxu0 %v609
  %v611 = vpop.f32.mrb[0].mxu0
  %v612 = vadd.f32 %v482, %v611
  %v613 = vpop.f32.mrb[0].mxu0
  %614 = vmatprep.mubr.f32.mxu0 0.0
  %v615 = vand.u32 %v95, 4294901760
  %v616 = vsub.f32 %v95, %v615
  %v617 = vand.u32 %v616, 4294901760
  %618 = vmatmul.mubr.f32.gmra.mrb[0].mxu0 %v617
  %v619 = vpop.f32.mrb[0].mxu0
  %v620 = vadd.f32 %v489, %v619
  %v621 = vpop.f32.mrb[0].mxu0
  %622 = vdwg.mxu0
  %623 = vmatprep.subr.mxu0 0.0
  %v624 = vand.u32 %v70, 4294901760
  %v625 = vsub.f32 %v70, %v624
  %v626 = vand.u32 %v625, 4294901760
  %627 = vmatpush1.msra.mxu0 %v626
  %628 = vmatprep.subr.mxu0 0.0
  %v629 = vand.u32 %v71, 4294901760
  %v630 = vsub.f32 %v71, %v629
  %v631 = vand.u32 %v630, 4294901760
  %632 = vmatpush1.msra.mxu0 %v631
  %633 = vmatprep.subr.mxu0 0.0
  %634 = vmatpush1.msra.mxu0 0.0
  %635 = vmatprep.subr.mxu0 0.0
  %636 = vmatpush1.msra.mxu0 0.0
  %637 = vmatprep.subr.mxu0 0.0
  %638 = vmatpush1.msra.mxu0 0.0
  %639 = vmatprep.subr.mxu0 0.0
  %640 = vmatpush1.msra.mxu0 0.0
  %641 = vmatprep.subr.mxu0 0.0
  %642 = vmatpush1.msra.mxu0 0.0
  %643 = vmatprep.subr.mxu0 0.0
  %644 = vmatpush1.msra.mxu0 0.0
  %645 = vmatprep.subr.mxu0 0.0
  %646 = vmatpush1.msra.mxu0 0.0
  %647 = vmatprep.subr.mxu0 0.0
  %648 = vmatpush1.msra.mxu0 0.0
  %649 = vmatprep.subr.mxu0 0.0
  %650 = vmatpush1.msra.mxu0 0.0
  %651 = vmatprep.subr.mxu0 0.0
  %652 = vmatpush1.msra.mxu0 0.0
  %653 = vmatprep.subr.mxu0 0.0
  %654 = vmatpush1.msra.mxu0 0.0
  %655 = vmatprep.subr.mxu0 0.0
  %656 = vmatpush1.msra.mxu0 0.0
  %657 = vmatprep.subr.mxu0 0.0
  %658 = vmatpush1.msra.mxu0 0.0
  %659 = vmatprep.subr.mxu0 0.0
  %660 = vmatpush1.msra.mxu0 0.0
  %661 = vmatprep.subr.mxu0 0.0
  %662 = vmatpush1.msra.mxu0 0.0
  %663 = vmatprep.subr.mxu0 0.0
  %664 = vmatpush1.msra.mxu0 0.0
  %665 = vmatprep.subr.mxu0 0.0
  %666 = vmatpush1.msra.mxu0 0.0
  %667 = vmatprep.subr.mxu0 0.0
  %668 = vmatpush1.msra.mxu0 0.0
  %669 = vmatprep.subr.mxu0 0.0
  %670 = vmatpush1.msra.mxu0 0.0
  %671 = vmatprep.subr.mxu0 0.0
  %672 = vmatpush1.msra.mxu0 0.0
  %673 = vmatprep.subr.mxu0 0.0
  %674 = vmatpush1.msra.mxu0 0.0
  %675 = vmatprep.subr.mxu0 0.0
  %676 = vmatpush1.msra.mxu0 0.0
  %677 = vmatprep.subr.mxu0 0.0
  %678 = vmatpush1.msra.mxu0 0.0
  %679 = vmatprep.subr.mxu0 0.0
  %680 = vmatpush1.msra.mxu0 0.0
  %681 = vmatprep.subr.mxu0 0.0
  %682 = vmatpush1.msra.mxu0 0.0
  %683 = vmatprep.subr.mxu0 0.0
  %684 = vmatpush1.msra.mxu0 0.0
  %685 = vmatprep.subr.mxu0 0.0
  %686 = vmatpush1.msra.mxu0 0.0
  %687 = vmatprep.subr.mxu0 0.0
  %688 = vmatpush1.msra.mxu0 0.0
  %689 = vmatprep.subr.mxu0 0.0
  %690 = vmatpush1.msra.mxu0 0.0
  %691 = vmatprep.subr.mxu0 0.0
  %692 = vmatpush1.msra.mxu0 0.0
  %693 = vmatprep.mubr.f32.mxu0 0.0
  %v694 = vand.u32 %v74, 4294901760
  %695 = vmatmul.mubr.f32.gmra.mrb[0].mxu0 %v694
  %v696 = vpop.f32.mrb[0].mxu0
  %v697 = vadd.f32 %v564, %v696
  %v698 = vpop.f32.mrb[0].mxu0
  %699 = vmatprep.mubr.f32.mxu0 0.0
  %v700 = vand.u32 %v77, 4294901760
  %701 = vmatmul.mubr.f32.gmra.mrb[0].mxu0 %v700
  %v702 = vpop.f32.mrb[0].mxu0
  %v703 = vadd.f32 %v572, %v702
  %v704 = vpop.f32.mrb[0].mxu0
  %705 = vmatprep.mubr.f32.mxu0 0.0
  %v706 = vand.u32 %v80, 4294901760
  %707 = vmatmul.mubr.f32.gmra.mrb[0].mxu0 %v706
  %v708 = vpop.f32.mrb[0].mxu0
  %v709 = vadd.f32 %v580, %v708
  %v710 = vpop.f32.mrb[0].mxu0
  %711 = vmatprep.mubr.f32.mxu0 0.0
  %v712 = vand.u32 %v83, 4294901760
  %713 = vmatmul.mubr.f32.gmra.mrb[0].mxu0 %v712
  %v714 = vpop.f32.mrb[0].mxu0
  %v715 = vadd.f32 %v588, %v714
  %v716 = vpop.f32.mrb[0].mxu0
  %717 = vmatprep.mubr.f32.mxu0 0.0
  %v718 = vand.u32 %v86, 4294901760
  %719 = vmatmul.mubr.f32.gmra.mrb[0].mxu0 %v718
  %v720 = vpop.f32.mrb[0].mxu0
  %v721 = vadd.f32 %v596, %v720
  %v722 = vpop.f32.mrb[0].mxu0
  %723 = vmatprep.mubr.f32.mxu0 0.0
  %v724 = vand.u32 %v89, 4294901760
  %725 = vmatmul.mubr.f32.gmra.mrb[0].mxu0 %v724
  %v726 = vpop.f32.mrb[0].mxu0
  %v727 = vadd.f32 %v604, %v726
  %v728 = vpop.f32.mrb[0].mxu0
  %729 = vmatprep.mubr.f32.mxu0 0.0
  %v730 = vand.u32 %v92, 4294901760
  %731 = vmatmul.mubr.f32.gmra.mrb[0].mxu0 %v730
  %v732 = vpop.f32.mrb[0].mxu0
  %v733 = vadd.f32 %v612, %v732
  %v734 = vpop.f32.mrb[0].mxu0
  %735 = vmatprep.mubr.f32.mxu0 0.0
  %v736 = vand.u32 %v95, 4294901760
  %737 = vmatmul.mubr.f32.gmra.mrb[0].mxu0 %v736
  %v738 = vpop.f32.mrb[0].mxu0
  %v739 = vadd.f32 %v620, %v738
  %v740 = vpop.f32.mrb[0].mxu0
  %741 = vdwg.mxu0
  %742 = vmatprep.subr.mxu0 0.0
  %v743 = vand.u32 %v70, 4294901760
  %744 = vmatpush1.msra.mxu0 %v743
  %745 = vmatprep.subr.mxu0 0.0
  %v746 = vand.u32 %v71, 4294901760
  %747 = vmatpush1.msra.mxu0 %v746
  %748 = vmatprep.subr.mxu0 0.0
  %749 = vmatpush1.msra.mxu0 0.0
  %750 = vmatprep.subr.mxu0 0.0
  %751 = vmatpush1.msra.mxu0 0.0
  %752 = vmatprep.subr.mxu0 0.0
  %753 = vmatpush1.msra.mxu0 0.0
  %754 = vmatprep.subr.mxu0 0.0
  %755 = vmatpush1.msra.mxu0 0.0
  %756 = vmatprep.subr.mxu0 0.0
  %757 = vmatpush1.msra.mxu0 0.0
  %758 = vmatprep.subr.mxu0 0.0
  %759 = vmatpush1.msra.mxu0 0.0
  %760 = vmatprep.subr.mxu0 0.0
  %761 = vmatpush1.msra.mxu0 0.0
  %762 = vmatprep.subr.mxu0 0.0
  %763 = vmatpush1.msra.mxu0 0.0
  %764 = vmatprep.subr.mxu0 0.0
  %765 = vmatpush1.msra.mxu0 0.0
  %766 = vmatprep.subr.mxu0 0.0
  %767 = vmatpush1.msra.mxu0 0.0
  %768 = vmatprep.subr.mxu0 0.0
  %769 = vmatpush1.msra.mxu0 0.0
  %770 = vmatprep.subr.mxu0 0.0
  %771 = vmatpush1.msra.mxu0 0.0
  %772 = vmatprep.subr.mxu0 0.0
  %773 = vmatpush1.msra.mxu0 0.0
  %774 = vmatprep.subr.mxu0 0.0
  %775 = vmatpush1.msra.mxu0 0.0
  %776 = vmatprep.subr.mxu0 0.0
  %777 = vmatpush1.msra.mxu0 0.0
  %778 = vmatprep.subr.mxu0 0.0
  %779 = vmatpush1.msra.mxu0 0.0
  %780 = vmatprep.subr.mxu0 0.0
  %781 = vmatpush1.msra.mxu0 0.0
  %782 = vmatprep.subr.mxu0 0.0
  %783 = vmatpush1.msra.mxu0 0.0
  %784 = vmatprep.subr.mxu0 0.0
  %785 = vmatpush1.msra.mxu0 0.0
  %786 = vmatprep.subr.mxu0 0.0
  %787 = vmatpush1.msra.mxu0 0.0
  %788 = vmatprep.subr.mxu0 0.0
  %789 = vmatpush1.msra.mxu0 0.0
  %790 = vmatprep.subr.mxu0 0.0
  %791 = vmatpush1.msra.mxu0 0.0
  %792 = vmatprep.subr.mxu0 0.0
  %793 = vmatpush1.msra.mxu0 0.0
  %794 = vmatprep.subr.mxu0 0.0
  %795 = vmatpush1.msra.mxu0 0.0
  %796 = vmatprep.subr.mxu0 0.0
  %797 = vmatpush1.msra.mxu0 0.0
  %798 = vmatprep.subr.mxu0 0.0
  %799 = vmatpush1.msra.mxu0 0.0
  %800 = vmatprep.subr.mxu0 0.0
  %801 = vmatpush1.msra.mxu0 0.0
  %802 = vmatprep.subr.mxu0 0.0
  %803 = vmatpush1.msra.mxu0 0.0
  %804 = vmatprep.subr.mxu0 0.0
  %805 = vmatpush1.msra.mxu0 0.0
  %806 = vmatprep.subr.mxu0 0.0
  %807 = vmatpush1.msra.mxu0 0.0
  %808 = vmatprep.mubr.f32.mxu0 0.0
  %v809 = vand.u32 %v74, 4294901760
  %810 = vmatmul.mubr.f32.gmra.mrb[0].mxu0 %v809
  %v811 = vpop.f32.mrb[0].mxu0
  %v812 = vadd.f32 %v697, %v811
  %v813 = vpop.f32.mrb[0].mxu0
  %814 = vmatprep.mubr.f32.mxu0 0.0
  %v815 = vand.u32 %v77, 4294901760
  %816 = vmatmul.mubr.f32.gmra.mrb[0].mxu0 %v815
  %v817 = vpop.f32.mrb[0].mxu0
  %v818 = vadd.f32 %v703, %v817
  %v819 = vpop.f32.mrb[0].mxu0
  %820 = vmatprep.mubr.f32.mxu0 0.0
  %v821 = vand.u32 %v80, 4294901760
  %822 = vmatmul.mubr.f32.gmra.mrb[0].mxu0 %v821
  %v823 = vpop.f32.mrb[0].mxu0
  %v824 = vadd.f32 %v709, %v823
  %v825 = vpop.f32.mrb[0].mxu0
  %826 = vmatprep.mubr.f32.mxu0 0.0
  %v827 = vand.u32 %v83, 4294901760
  %828 = vmatmul.mubr.f32.gmra.mrb[0].mxu0 %v827
  %v829 = vpop.f32.mrb[0].mxu0
  %v830 = vadd.f32 %v715, %v829
  %v831 = vpop.f32.mrb[0].mxu0
  %832 = vmatprep.mubr.f32.mxu0 0.0
  %v833 = vand.u32 %v86, 4294901760
  %834 = vmatmul.mubr.f32.gmra.mrb[0].mxu0 %v833
  %v835 = vpop.f32.mrb[0].mxu0
  %v836 = vadd.f32 %v721, %v835
  %v837 = vpop.f32.mrb[0].mxu0
  %838 = vmatprep.mubr.f32.mxu0 0.0
  %v839 = vand.u32 %v89, 4294901760
  %840 = vmatmul.mubr.f32.gmra.mrb[0].mxu0 %v839
  %v841 = vpop.f32.mrb[0].mxu0
  %v842 = vadd.f32 %v727, %v841
  %v843 = vpop.f32.mrb[0].mxu0
  %844 = vmatprep.mubr.f32.mxu0 0.0
  %v845 = vand.u32 %v92, 4294901760
  %846 = vmatmul.mubr.f32.gmra.mrb[0].mxu0 %v845
  %v847 = vpop.f32.mrb[0].mxu0
  %v848 = vadd.f32 %v733, %v847
  %v849 = vpop.f32.mrb[0].mxu0
  %850 = vmatprep.mubr.f32.mxu0 0.0
  %v851 = vand.u32 %v95, 4294901760
  %852 = vmatmul.mubr.f32.gmra.mrb[0].mxu0 %v851
  %v853 = vpop.f32.mrb[0].mxu0
  %v854 = vadd.f32 %v739, %v853
  %v855 = vpop.f32.mrb[0].mxu0
  %856 = vdwg.mxu0
  %v857 = vld [vmem:[%s3] sm:$0xff]
  %v858 = vld [vmem:[%s3 + $0x8] sm:$0xff]
  %v860 = vsel %vm72, %v62, 0
  %v863 = vsel %vm72, %v63, 0
  %v866 = vsel %vm72, %v64, 0
  %v869 = vsel %vm72, %v65, 0
  %v872 = vsel %vm72, %v66, 0
  %v875 = vsel %vm72, %v67, 0
  %v878 = vsel %vm72, %v68, 0
  %v881 = vsel %vm72, %v69, 0
  %883 = vmatprep.subr.mxu0 0.0
  %v884 = vand.u32 %v857, 4294901760
  %885 = vmatpush1.msra.mxu0 %v884
  %886 = vmatprep.subr.mxu0 0.0
  %v887 = vand.u32 %v858, 4294901760
  %888 = vmatpush1.msra.mxu0 %v887
  %889 = vmatprep.subr.mxu0 0.0
  %890 = vmatpush1.msra.mxu0 0.0
  %891 = vmatprep.subr.mxu0 0.0
  %892 = vmatpush1.msra.mxu0 0.0
  %893 = vmatprep.subr.mxu0 0.0
  %894 = vmatpush1.msra.mxu0 0.0
  %895 = vmatprep.subr.mxu0 0.0
  %896 = vmatpush1.msra.mxu0 0.0
  %897 = vmatprep.subr.mxu0 0.0
  %898 = vmatpush1.msra.mxu0 0.0
  %899 = vmatprep.subr.mxu0 0.0
  %900 = vmatpush1.msra.mxu0 0.0
  %901 = vmatprep.subr.mxu0 0.0
  %902 = vmatpush1.msra.mxu0 0.0
  %903 = vmatprep.subr.mxu0 0.0
  %904 = vmatpush1.msra.mxu0 0.0
  %905 = vmatprep.subr.mxu0 0.0
  %906 = vmatpush1.msra.mxu0 0.0
  %907 = vmatprep.subr.mxu0 0.0
  %908 = vmatpush1.msra.mxu0 0.0
  %909 = vmatprep.subr.mxu0 0.0
  %910 = vmatpush1.msra.mxu0 0.0
  %911 = vmatprep.subr.mxu0 0.0
  %912 = vmatpush1.msra.mxu0 0.0
  %913 = vmatprep.subr.mxu0 0.0
  %914 = vmatpush1.msra.mxu0 0.0
  %915 = vmatprep.subr.mxu0 0.0
  %916 = vmatpush1.msra.mxu0 0.0
  %917 = vmatprep.subr.mxu0 0.0
  %918 = vmatpush1.msra.mxu0 0.0
  %919 = vmatprep.subr.mxu0 0.0
  %920 = vmatpush1.msra.mxu0 0.0
  %921 = vmatprep.subr.mxu0 0.0
  %922 = vmatpush1.msra.mxu0 0.0
  %923 = vmatprep.subr.mxu0 0.0
  %924 = vmatpush1.msra.mxu0 0.0
  %925 = vmatprep.subr.mxu0 0.0
  %926 = vmatpush1.msra.mxu0 0.0
  %927 = vmatprep.subr.mxu0 0.0
  %928 = vmatpush1.msra.mxu0 0.0
  %929 = vmatprep.subr.mxu0 0.0
  %930 = vmatpush1.msra.mxu0 0.0
  %931 = vmatprep.subr.mxu0 0.0
  %932 = vmatpush1.msra.mxu0 0.0
  %933 = vmatprep.subr.mxu0 0.0
  %934 = vmatpush1.msra.mxu0 0.0
  %935 = vmatprep.subr.mxu0 0.0
  %936 = vmatpush1.msra.mxu0 0.0
  %937 = vmatprep.subr.mxu0 0.0
  %938 = vmatpush1.msra.mxu0 0.0
  %939 = vmatprep.subr.mxu0 0.0
  %940 = vmatpush1.msra.mxu0 0.0
  %941 = vmatprep.subr.mxu0 0.0
  %942 = vmatpush1.msra.mxu0 0.0
  %943 = vmatprep.subr.mxu0 0.0
  %944 = vmatpush1.msra.mxu0 0.0
  %945 = vmatprep.subr.mxu0 0.0
  %946 = vmatpush1.msra.mxu0 0.0
  %947 = vmatprep.subr.mxu0 0.0
  %948 = vmatpush1.msra.mxu0 0.0
  %949 = vmatprep.mubr.f32.mxu0 0.0
  %v950 = vand.u32 %v860, 4294901760
  %v951 = vsub.f32 %v860, %v950
  %v952 = vand.u32 %v951, 4294901760
  %v953 = vsub.f32 %v951, %v952
  %v954 = vand.u32 %v953, 4294901760
  %955 = vmatmul.mubr.f32.gmra.mrb[0].mxu0 %v954
  %v956 = vpop.f32.mrb[0].mxu0
  %v957 = vadd.f32 0.0, %v956
  %v958 = vpop.f32.mrb[0].mxu0
  %959 = vmatprep.mubr.f32.mxu0 0.0
  %v960 = vand.u32 %v863, 4294901760
  %v961 = vsub.f32 %v863, %v960
  %v962 = vand.u32 %v961, 4294901760
  %v963 = vsub.f32 %v961, %v962
  %v964 = vand.u32 %v963, 4294901760
  %965 = vmatmul.mubr.f32.gmra.mrb[0].mxu0 %v964
  %v966 = vpop.f32.mrb[0].mxu0
  %v967 = vadd.f32 0.0, %v966
  %v968 = vpop.f32.mrb[0].mxu0
  %969 = vmatprep.mubr.f32.mxu0 0.0
  %v970 = vand.u32 %v866, 4294901760
  %v971 = vsub.f32 %v866, %v970
  %v972 = vand.u32 %v971, 4294901760
  %v973 = vsub.f32 %v971, %v972
  %v974 = vand.u32 %v973, 4294901760
  %975 = vmatmul.mubr.f32.gmra.mrb[0].mxu0 %v974
  %v976 = vpop.f32.mrb[0].mxu0
  %v977 = vadd.f32 0.0, %v976
  %v978 = vpop.f32.mrb[0].mxu0
  %979 = vmatprep.mubr.f32.mxu0 0.0
  %v980 = vand.u32 %v869, 4294901760
  %v981 = vsub.f32 %v869, %v980
  %v982 = vand.u32 %v981, 4294901760
  %v983 = vsub.f32 %v981, %v982
  %v984 = vand.u32 %v983, 4294901760
  %985 = vmatmul.mubr.f32.gmra.mrb[0].mxu0 %v984
  %v986 = vpop.f32.mrb[0].mxu0
  %v987 = vadd.f32 0.0, %v986
  %v988 = vpop.f32.mrb[0].mxu0
  %989 = vmatprep.mubr.f32.mxu0 0.0
  %v990 = vand.u32 %v872, 4294901760
  %v991 = vsub.f32 %v872, %v990
  %v992 = vand.u32 %v991, 4294901760
  %v993 = vsub.f32 %v991, %v992
  %v994 = vand.u32 %v993, 4294901760
  %995 = vmatmul.mubr.f32.gmra.mrb[0].mxu0 %v994
  %v996 = vpop.f32.mrb[0].mxu0
  %v997 = vadd.f32 0.0, %v996
  %v998 = vpop.f32.mrb[0].mxu0
  %999 = vmatprep.mubr.f32.mxu0 0.0
  %v1000 = vand.u32 %v875, 4294901760
  %v1001 = vsub.f32 %v875, %v1000
  %v1002 = vand.u32 %v1001, 4294901760
  %v1003 = vsub.f32 %v1001, %v1002
  %v1004 = vand.u32 %v1003, 4294901760
  %1005 = vmatmul.mubr.f32.gmra.mrb[0].mxu0 %v1004
  %v1006 = vpop.f32.mrb[0].mxu0
  %v1007 = vadd.f32 0.0, %v1006
  %v1008 = vpop.f32.mrb[0].mxu0
  %1009 = vmatprep.mubr.f32.mxu0 0.0
  %v1010 = vand.u32 %v878, 4294901760
  %v1011 = vsub.f32 %v878, %v1010
  %v1012 = vand.u32 %v1011, 4294901760
  %v1013 = vsub.f32 %v1011, %v1012
  %v1014 = vand.u32 %v1013, 4294901760
  %1015 = vmatmul.mubr.f32.gmra.mrb[0].mxu0 %v1014
  %v1016 = vpop.f32.mrb[0].mxu0
  %v1017 = vadd.f32 0.0, %v1016
  %v1018 = vpop.f32.mrb[0].mxu0
  %1019 = vmatprep.mubr.f32.mxu0 0.0
  %v1020 = vand.u32 %v881, 4294901760
  %v1021 = vsub.f32 %v881, %v1020
  %v1022 = vand.u32 %v1021, 4294901760
  %v1023 = vsub.f32 %v1021, %v1022
  %v1024 = vand.u32 %v1023, 4294901760
  %1025 = vmatmul.mubr.f32.gmra.mrb[0].mxu0 %v1024
  %v1026 = vpop.f32.mrb[0].mxu0
  %v1027 = vadd.f32 0.0, %v1026
  %v1028 = vpop.f32.mrb[0].mxu0
  %1029 = vdwg.mxu0
  %1030 = vmatprep.subr.mxu0 0.0
  %v1031 = vand.u32 %v857, 4294901760
  %v1032 = vsub.f32 %v857, %v1031
  %v1033 = vand.u32 %v1032, 4294901760
  %v1034 = vsub.f32 %v1032, %v1033
  %v1035 = vand.u32 %v1034, 4294901760
  %1036 = vmatpush1.msra.mxu0 %v1035
  %1037 = vmatprep.subr.mxu0 0.0
  %v1038 = vand.u32 %v858, 4294901760
  %v1039 = vsub.f32 %v858, %v1038
  %v1040 = vand.u32 %v1039, 4294901760
  %v1041 = vsub.f32 %v1039, %v1040
  %v1042 = vand.u32 %v1041, 4294901760
  %1043 = vmatpush1.msra.mxu0 %v1042
  %1044 = vmatprep.subr.mxu0 0.0
  %1045 = vmatpush1.msra.mxu0 0.0
  %1046 = vmatprep.subr.mxu0 0.0
  %1047 = vmatpush1.msra.mxu0 0.0
  %1048 = vmatprep.subr.mxu0 0.0
  %1049 = vmatpush1.msra.mxu0 0.0
  %1050 = vmatprep.subr.mxu0 0.0
  %1051 = vmatpush1.msra.mxu0 0.0
  %1052 = vmatprep.subr.mxu0 0.0
  %1053 = vmatpush1.msra.mxu0 0.0
  %1054 = vmatprep.subr.mxu0 0.0
  %1055 = vmatpush1.msra.mxu0 0.0
  %1056 = vmatprep.subr.mxu0 0.0
  %1057 = vmatpush1.msra.mxu0 0.0
  %1058 = vmatprep.subr.mxu0 0.0
  %1059 = vmatpush1.msra.mxu0 0.0
  %1060 = vmatprep.subr.mxu0 0.0
  %1061 = vmatpush1.msra.mxu0 0.0
  %1062 = vmatprep.subr.mxu0 0.0
  %1063 = vmatpush1.msra.mxu0 0.0
  %1064 = vmatprep.subr.mxu0 0.0
  %1065 = vmatpush1.msra.mxu0 0.0
  %1066 = vmatprep.subr.mxu0 0.0
  %1067 = vmatpush1.msra.mxu0 0.0
  %1068 = vmatprep.subr.mxu0 0.0
  %1069 = vmatpush1.msra.mxu0 0.0
  %1070 = vmatprep.subr.mxu0 0.0
  %1071 = vmatpush1.msra.mxu0 0.0
  %1072 = vmatprep.subr.mxu0 0.0
  %1073 = vmatpush1.msra.mxu0 0.0
  %1074 = vmatprep.subr.mxu0 0.0
  %1075 = vmatpush1.msra.mxu0 0.0
  %1076 = vmatprep.subr.mxu0 0.0
  %1077 = vmatpush1.msra.mxu0 0.0
  %1078 = vmatprep.subr.mxu0 0.0
  %1079 = vmatpush1.msra.mxu0 0.0
  %1080 = vmatprep.subr.mxu0 0.0
  %1081 = vmatpush1.msra.mxu0 0.0
  %1082 = vmatprep.subr.mxu0 0.0
  %1083 = vmatpush1.msra.mxu0 0.0
  %1084 = vmatprep.subr.mxu0 0.0
  %1085 = vmatpush1.msra.mxu0 0.0
  %1086 = vmatprep.subr.mxu0 0.0
  %1087 = vmatpush1.msra.mxu0 0.0
  %1088 = vmatprep.subr.mxu0 0.0
  %1089 = vmatpush1.msra.mxu0 0.0
  %1090 = vmatprep.subr.mxu0 0.0
  %1091 = vmatpush1.msra.mxu0 0.0
  %1092 = vmatprep.subr.mxu0 0.0
  %1093 = vmatpush1.msra.mxu0 0.0
  %1094 = vmatprep.subr.mxu0 0.0
  %1095 = vmatpush1.msra.mxu0 0.0
  %1096 = vmatprep.subr.mxu0 0.0
  %1097 = vmatpush1.msra.mxu0 0.0
  %1098 = vmatprep.subr.mxu0 0.0
  %1099 = vmatpush1.msra.mxu0 0.0
  %1100 = vmatprep.subr.mxu0 0.0
  %1101 = vmatpush1.msra.mxu0 0.0
  %1102 = vmatprep.subr.mxu0 0.0
  %1103 = vmatpush1.msra.mxu0 0.0
  %1104 = vmatprep.mubr.f32.mxu0 0.0
  %v1105 = vand.u32 %v860, 4294901760
  %1106 = vmatmul.mubr.f32.gmra.mrb[0].mxu0 %v1105
  %v1107 = vpop.f32.mrb[0].mxu0
  %v1108 = vadd.f32 %v957, %v1107
  %v1109 = vpop.f32.mrb[0].mxu0
  %1110 = vmatprep.mubr.f32.mxu0 0.0
  %v1111 = vand.u32 %v863, 4294901760
  %1112 = vmatmul.mubr.f32.gmra.mrb[0].mxu0 %v1111
  %v1113 = vpop.f32.mrb[0].mxu0
  %v1114 = vadd.f32 %v967, %v1113
  %v1115 = vpop.f32.mrb[0].mxu0
  %1116 = vmatprep.mubr.f32.mxu0 0.0
  %v1117 = vand.u32 %v866, 4294901760
  %1118 = vmatmul.mubr.f32.gmra.mrb[0].mxu0 %v1117
  %v1119 = vpop.f32.mrb[0].mxu0
  %v1120 = vadd.f32 %v977, %v1119
  %v1121 = vpop.f32.mrb[0].mxu0
  %1122 = vmatprep.mubr.f32.mxu0 0.0
  %v1123 = vand.u32 %v869, 4294901760
  %1124 = vmatmul.mubr.f32.gmra.mrb[0].mxu0 %v1123
  %v1125 = vpop.f32.mrb[0].mxu0
  %v1126 = vadd.f32 %v987, %v1125
  %v1127 = vpop.f32.mrb[0].mxu0
  %1128 = vmatprep.mubr.f32.mxu0 0.0
  %v1129 = vand.u32 %v872, 4294901760
  %1130 = vmatmul.mubr.f32.gmra.mrb[0].mxu0 %v1129
  %v1131 = vpop.f32.mrb[0].mxu0
  %v1132 = vadd.f32 %v997, %v1131
  %v1133 = vpop.f32.mrb[0].mxu0
  %1134 = vmatprep.mubr.f32.mxu0 0.0
  %v1135 = vand.u32 %v875, 4294901760
  %1136 = vmatmul.mubr.f32.gmra.mrb[0].mxu0 %v1135
  %v1137 = vpop.f32.mrb[0].mxu0
  %v1138 = vadd.f32 %v1007, %v1137
  %v1139 = vpop.f32.mrb[0].mxu0
  %1140 = vmatprep.mubr.f32.mxu0 0.0
  %v1141 = vand.u32 %v878, 4294901760
  %1142 = vmatmul.mubr.f32.gmra.mrb[0].mxu0 %v1141
  %v1143 = vpop.f32.mrb[0].mxu0
  %v1144 = vadd.f32 %v1017, %v1143
  %v1145 = vpop.f32.mrb[0].mxu0
  %1146 = vmatprep.mubr.f32.mxu0 0.0
  %v1147 = vand.u32 %v881, 4294901760
  %1148 = vmatmul.mubr.f32.gmra.mrb[0].mxu0 %v1147
  %v1149 = vpop.f32.mrb[0].mxu0
  %v1150 = vadd.f32 %v1027, %v1149
  %v1151 = vpop.f32.mrb[0].mxu0
  %1152 = vdwg.mxu0
  %1153 = vmatprep.subr.mxu0 0.0
  %v1154 = vand.u32 %v857, 4294901760
  %v1155 = vsub.f32 %v857, %v1154
  %1156 = vmatpush1.msra.mxu0 %v1155
  %1157 = vmatprep.subr.mxu0 0.0
  %v1158 = vand.u32 %v858, 4294901760
  %v1159 = vsub.f32 %v858, %v1158
  %1160 = vmatpush1.msra.mxu0 %v1159
  %1161 = vmatprep.subr.mxu0 0.0
  %1162 = vmatpush1.msra.mxu0 0.0
  %1163 = vmatprep.subr.mxu0 0.0
  %1164 = vmatpush1.msra.mxu0 0.0
  %1165 = vmatprep.subr.mxu0 0.0
  %1166 = vmatpush1.msra.mxu0 0.0
  %1167 = vmatprep.subr.mxu0 0.0
  %1168 = vmatpush1.msra.mxu0 0.0
  %1169 = vmatprep.subr.mxu0 0.0
  %1170 = vmatpush1.msra.mxu0 0.0
  %1171 = vmatprep.subr.mxu0 0.0
  %1172 = vmatpush1.msra.mxu0 0.0
  %1173 = vmatprep.subr.mxu0 0.0
  %1174 = vmatpush1.msra.mxu0 0.0
  %1175 = vmatprep.subr.mxu0 0.0
  %1176 = vmatpush1.msra.mxu0 0.0
  %1177 = vmatprep.subr.mxu0 0.0
  %1178 = vmatpush1.msra.mxu0 0.0
  %1179 = vmatprep.subr.mxu0 0.0
  %1180 = vmatpush1.msra.mxu0 0.0
  %1181 = vmatprep.subr.mxu0 0.0
  %1182 = vmatpush1.msra.mxu0 0.0
  %1183 = vmatprep.subr.mxu0 0.0
  %1184 = vmatpush1.msra.mxu0 0.0
  %1185 = vmatprep.subr.mxu0 0.0
  %1186 = vmatpush1.msra.mxu0 0.0
  %1187 = vmatprep.subr.mxu0 0.0
  %1188 = vmatpush1.msra.mxu0 0.0
  %1189 = vmatprep.subr.mxu0 0.0
  %1190 = vmatpush1.msra.mxu0 0.0
  %1191 = vmatprep.subr.mxu0 0.0
  %1192 = vmatpush1.msra.mxu0 0.0
  %1193 = vmatprep.subr.mxu0 0.0
  %1194 = vmatpush1.msra.mxu0 0.0
  %1195 = vmatprep.subr.mxu0 0.0
  %1196 = vmatpush1.msra.mxu0 0.0
  %1197 = vmatprep.subr.mxu0 0.0
  %1198 = vmatpush1.msra.mxu0 0.0
  %1199 = vmatprep.subr.mxu0 0.0
  %1200 = vmatpush1.msra.mxu0 0.0
  %1201 = vmatprep.subr.mxu0 0.0
  %1202 = vmatpush1.msra.mxu0 0.0
  %1203 = vmatprep.subr.mxu0 0.0
  %1204 = vmatpush1.msra.mxu0 0.0
  %1205 = vmatprep.subr.mxu0 0.0
  %1206 = vmatpush1.msra.mxu0 0.0
  %1207 = vmatprep.subr.mxu0 0.0
  %1208 = vmatpush1.msra.mxu0 0.0
  %1209 = vmatprep.subr.mxu0 0.0
  %1210 = vmatpush1.msra.mxu0 0.0
  %1211 = vmatprep.subr.mxu0 0.0
  %1212 = vmatpush1.msra.mxu0 0.0
  %1213 = vmatprep.subr.mxu0 0.0
  %1214 = vmatpush1.msra.mxu0 0.0
  %1215 = vmatprep.subr.mxu0 0.0
  %1216 = vmatpush1.msra.mxu0 0.0
  %1217 = vmatprep.subr.mxu0 0.0
  %1218 = vmatpush1.msra.mxu0 0.0
  %1219 = vmatprep.subr.mxu0 0.0
  %1220 = vmatpush1.msra.mxu0 0.0
  %1221 = vmatprep.mubr.f32.mxu0 0.0
  %v1222 = vand.u32 %v860, 4294901760
  %v1223 = vsub.f32 %v860, %v1222
  %1224 = vmatmul.mubr.f32.gmra.mrb[0].mxu0 %v1223
  %v1225 = vpop.f32.mrb[0].mxu0
  %v1226 = vadd.f32 %v1108, %v1225
  %v1227 = vpop.f32.mrb[0].mxu0
  %1228 = vmatprep.mubr.f32.mxu0 0.0
  %v1229 = vand.u32 %v863, 4294901760
  %v1230 = vsub.f32 %v863, %v1229
  %1231 = vmatmul.mubr.f32.gmra.mrb[0].mxu0 %v1230
  %v1232 = vpop.f32.mrb[0].mxu0
  %v1233 = vadd.f32 %v1114, %v1232
  %v1234 = vpop.f32.mrb[0].mxu0
  %1235 = vmatprep.mubr.f32.mxu0 0.0
  %v1236 = vand.u32 %v866, 4294901760
  %v1237 = vsub.f32 %v866, %v1236
  %1238 = vmatmul.mubr.f32.gmra.mrb[0].mxu0 %v1237
  %v1239 = vpop.f32.mrb[0].mxu0
  %v1240 = vadd.f32 %v1120, %v1239
  %v1241 = vpop.f32.mrb[0].mxu0
  %1242 = vmatprep.mubr.f32.mxu0 0.0
  %v1243 = vand.u32 %v869, 4294901760
  %v1244 = vsub.f32 %v869, %v1243
  %1245 = vmatmul.mubr.f32.gmra.mrb[0].mxu0 %v1244
  %v1246 = vpop.f32.mrb[0].mxu0
  %v1247 = vadd.f32 %v1126, %v1246
  %v1248 = vpop.f32.mrb[0].mxu0
  %1249 = vmatprep.mubr.f32.mxu0 0.0
  %v1250 = vand.u32 %v872, 4294901760
  %v1251 = vsub.f32 %v872, %v1250
  %1252 = vmatmul.mubr.f32.gmra.mrb[0].mxu0 %v1251
  %v1253 = vpop.f32.mrb[0].mxu0
  %v1254 = vadd.f32 %v1132, %v1253
  %v1255 = vpop.f32.mrb[0].mxu0
  %1256 = vmatprep.mubr.f32.mxu0 0.0
  %v1257 = vand.u32 %v875, 4294901760
  %v1258 = vsub.f32 %v875, %v1257
  %1259 = vmatmul.mubr.f32.gmra.mrb[0].mxu0 %v1258
  %v1260 = vpop.f32.mrb[0].mxu0
  %v1261 = vadd.f32 %v1138, %v1260
  %v1262 = vpop.f32.mrb[0].mxu0
  %1263 = vmatprep.mubr.f32.mxu0 0.0
  %v1264 = vand.u32 %v878, 4294901760
  %v1265 = vsub.f32 %v878, %v1264
  %1266 = vmatmul.mubr.f32.gmra.mrb[0].mxu0 %v1265
  %v1267 = vpop.f32.mrb[0].mxu0
  %v1268 = vadd.f32 %v1144, %v1267
  %v1269 = vpop.f32.mrb[0].mxu0
  %1270 = vmatprep.mubr.f32.mxu0 0.0
  %v1271 = vand.u32 %v881, 4294901760
  %v1272 = vsub.f32 %v881, %v1271
  %1273 = vmatmul.mubr.f32.gmra.mrb[0].mxu0 %v1272
  %v1274 = vpop.f32.mrb[0].mxu0
  %v1275 = vadd.f32 %v1150, %v1274
  %v1276 = vpop.f32.mrb[0].mxu0
  %1277 = vdwg.mxu0
  %1278 = vmatprep.subr.mxu0 0.0
  %v1279 = vand.u32 %v857, 4294901760
  %1280 = vmatpush1.msra.mxu0 %v1279
  %1281 = vmatprep.subr.mxu0 0.0
  %v1282 = vand.u32 %v858, 4294901760
  %1283 = vmatpush1.msra.mxu0 %v1282
  %1284 = vmatprep.subr.mxu0 0.0
  %1285 = vmatpush1.msra.mxu0 0.0
  %1286 = vmatprep.subr.mxu0 0.0
  %1287 = vmatpush1.msra.mxu0 0.0
  %1288 = vmatprep.subr.mxu0 0.0
  %1289 = vmatpush1.msra.mxu0 0.0
  %1290 = vmatprep.subr.mxu0 0.0
  %1291 = vmatpush1.msra.mxu0 0.0
  %1292 = vmatprep.subr.mxu0 0.0
  %1293 = vmatpush1.msra.mxu0 0.0
  %1294 = vmatprep.subr.mxu0 0.0
  %1295 = vmatpush1.msra.mxu0 0.0
  %1296 = vmatprep.subr.mxu0 0.0
  %1297 = vmatpush1.msra.mxu0 0.0
  %1298 = vmatprep.subr.mxu0 0.0
  %1299 = vmatpush1.msra.mxu0 0.0
  %1300 = vmatprep.subr.mxu0 0.0
  %1301 = vmatpush1.msra.mxu0 0.0
  %1302 = vmatprep.subr.mxu0 0.0
  %1303 = vmatpush1.msra.mxu0 0.0
  %1304 = vmatprep.subr.mxu0 0.0
  %1305 = vmatpush1.msra.mxu0 0.0
  %1306 = vmatprep.subr.mxu0 0.0
  %1307 = vmatpush1.msra.mxu0 0.0
  %1308 = vmatprep.subr.mxu0 0.0
  %1309 = vmatpush1.msra.mxu0 0.0
  %1310 = vmatprep.subr.mxu0 0.0
  %1311 = vmatpush1.msra.mxu0 0.0
  %1312 = vmatprep.subr.mxu0 0.0
  %1313 = vmatpush1.msra.mxu0 0.0
  %1314 = vmatprep.subr.mxu0 0.0
  %1315 = vmatpush1.msra.mxu0 0.0
  %1316 = vmatprep.subr.mxu0 0.0
  %1317 = vmatpush1.msra.mxu0 0.0
  %1318 = vmatprep.subr.mxu0 0.0
  %1319 = vmatpush1.msra.mxu0 0.0
  %1320 = vmatprep.subr.mxu0 0.0
  %1321 = vmatpush1.msra.mxu0 0.0
  %1322 = vmatprep.subr.mxu0 0.0
  %1323 = vmatpush1.msra.mxu0 0.0
  %1324 = vmatprep.subr.mxu0 0.0
  %1325 = vmatpush1.msra.mxu0 0.0
  %1326 = vmatprep.subr.mxu0 0.0
  %1327 = vmatpush1.msra.mxu0 0.0
  %1328 = vmatprep.subr.mxu0 0.0
  %1329 = vmatpush1.msra.mxu0 0.0
  %1330 = vmatprep.subr.mxu0 0.0
  %1331 = vmatpush1.msra.mxu0 0.0
  %1332 = vmatprep.subr.mxu0 0.0
  %1333 = vmatpush1.msra.mxu0 0.0
  %1334 = vmatprep.subr.mxu0 0.0
  %1335 = vmatpush1.msra.mxu0 0.0
  %1336 = vmatprep.subr.mxu0 0.0
  %1337 = vmatpush1.msra.mxu0 0.0
  %1338 = vmatprep.subr.mxu0 0.0
  %1339 = vmatpush1.msra.mxu0 0.0
  %1340 = vmatprep.subr.mxu0 0.0
  %1341 = vmatpush1.msra.mxu0 0.0
  %1342 = vmatprep.subr.mxu0 0.0
  %1343 = vmatpush1.msra.mxu0 0.0
  %1344 = vmatprep.mubr.f32.mxu0 0.0
  %v1345 = vand.u32 %v860, 4294901760
  %v1346 = vsub.f32 %v860, %v1345
  %v1347 = vand.u32 %v1346, 4294901760
  %1348 = vmatmul.mubr.f32.gmra.mrb[0].mxu0 %v1347
  %v1349 = vpop.f32.mrb[0].mxu0
  %v1350 = vadd.f32 %v1226, %v1349
  %v1351 = vpop.f32.mrb[0].mxu0
  %1352 = vmatprep.mubr.f32.mxu0 0.0
  %v1353 = vand.u32 %v863, 4294901760
  %v1354 = vsub.f32 %v863, %v1353
  %v1355 = vand.u32 %v1354, 4294901760
  %1356 = vmatmul.mubr.f32.gmra.mrb[0].mxu0 %v1355
  %v1357 = vpop.f32.mrb[0].mxu0
  %v1358 = vadd.f32 %v1233, %v1357
  %v1359 = vpop.f32.mrb[0].mxu0
  %1360 = vmatprep.mubr.f32.mxu0 0.0
  %v1361 = vand.u32 %v866, 4294901760
  %v1362 = vsub.f32 %v866, %v1361
  %v1363 = vand.u32 %v1362, 4294901760
  %1364 = vmatmul.mubr.f32.gmra.mrb[0].mxu0 %v1363
  %v1365 = vpop.f32.mrb[0].mxu0
  %v1366 = vadd.f32 %v1240, %v1365
  %v1367 = vpop.f32.mrb[0].mxu0
  %1368 = vmatprep.mubr.f32.mxu0 0.0
  %v1369 = vand.u32 %v869, 4294901760
  %v1370 = vsub.f32 %v869, %v1369
  %v1371 = vand.u32 %v1370, 4294901760
  %1372 = vmatmul.mubr.f32.gmra.mrb[0].mxu0 %v1371
  %v1373 = vpop.f32.mrb[0].mxu0
  %v1374 = vadd.f32 %v1247, %v1373
  %v1375 = vpop.f32.mrb[0].mxu0
  %1376 = vmatprep.mubr.f32.mxu0 0.0
  %v1377 = vand.u32 %v872, 4294901760
  %v1378 = vsub.f32 %v872, %v1377
  %v1379 = vand.u32 %v1378, 4294901760
  %1380 = vmatmul.mubr.f32.gmra.mrb[0].mxu0 %v1379
  %v1381 = vpop.f32.mrb[0].mxu0
  %v1382 = vadd.f32 %v1254, %v1381
  %v1383 = vpop.f32.mrb[0].mxu0
  %1384 = vmatprep.mubr.f32.mxu0 0.0
  %v1385 = vand.u32 %v875, 4294901760
  %v1386 = vsub.f32 %v875, %v1385
  %v1387 = vand.u32 %v1386, 4294901760
  %1388 = vmatmul.mubr.f32.gmra.mrb[0].mxu0 %v1387
  %v1389 = vpop.f32.mrb[0].mxu0
  %v1390 = vadd.f32 %v1261, %v1389
  %v1391 = vpop.f32.mrb[0].mxu0
  %1392 = vmatprep.mubr.f32.mxu0 0.0
  %v1393 = vand.u32 %v878, 4294901760
  %v1394 = vsub.f32 %v878, %v1393
  %v1395 = vand.u32 %v1394, 4294901760
  %1396 = vmatmul.mubr.f32.gmra.mrb[0].mxu0 %v1395
  %v1397 = vpop.f32.mrb[0].mxu0
  %v1398 = vadd.f32 %v1268, %v1397
  %v1399 = vpop.f32.mrb[0].mxu0
  %1400 = vmatprep.mubr.f32.mxu0 0.0
  %v1401 = vand.u32 %v881, 4294901760
  %v1402 = vsub.f32 %v881, %v1401
  %v1403 = vand.u32 %v1402, 4294901760
  %1404 = vmatmul.mubr.f32.gmra.mrb[0].mxu0 %v1403
  %v1405 = vpop.f32.mrb[0].mxu0
  %v1406 = vadd.f32 %v1275, %v1405
  %v1407 = vpop.f32.mrb[0].mxu0
  %1408 = vdwg.mxu0
  %1409 = vmatprep.subr.mxu0 0.0
  %v1410 = vand.u32 %v857, 4294901760
  %v1411 = vsub.f32 %v857, %v1410
  %v1412 = vand.u32 %v1411, 4294901760
  %1413 = vmatpush1.msra.mxu0 %v1412
  %1414 = vmatprep.subr.mxu0 0.0
  %v1415 = vand.u32 %v858, 4294901760
  %v1416 = vsub.f32 %v858, %v1415
  %v1417 = vand.u32 %v1416, 4294901760
  %1418 = vmatpush1.msra.mxu0 %v1417
  %1419 = vmatprep.subr.mxu0 0.0
  %1420 = vmatpush1.msra.mxu0 0.0
  %1421 = vmatprep.subr.mxu0 0.0
  %1422 = vmatpush1.msra.mxu0 0.0
  %1423 = vmatprep.subr.mxu0 0.0
  %1424 = vmatpush1.msra.mxu0 0.0
  %1425 = vmatprep.subr.mxu0 0.0
  %1426 = vmatpush1.msra.mxu0 0.0
  %1427 = vmatprep.subr.mxu0 0.0
  %1428 = vmatpush1.msra.mxu0 0.0
  %1429 = vmatprep.subr.mxu0 0.0
  %1430 = vmatpush1.msra.mxu0 0.0
  %1431 = vmatprep.subr.mxu0 0.0
  %1432 = vmatpush1.msra.mxu0 0.0
  %1433 = vmatprep.subr.mxu0 0.0
  %1434 = vmatpush1.msra.mxu0 0.0
  %1435 = vmatprep.subr.mxu0 0.0
  %1436 = vmatpush1.msra.mxu0 0.0
  %1437 = vmatprep.subr.mxu0 0.0
  %1438 = vmatpush1.msra.mxu0 0.0
  %1439 = vmatprep.subr.mxu0 0.0
  %1440 = vmatpush1.msra.mxu0 0.0
  %1441 = vmatprep.subr.mxu0 0.0
  %1442 = vmatpush1.msra.mxu0 0.0
  %1443 = vmatprep.subr.mxu0 0.0
  %1444 = vmatpush1.msra.mxu0 0.0
  %1445 = vmatprep.subr.mxu0 0.0
  %1446 = vmatpush1.msra.mxu0 0.0
  %1447 = vmatprep.subr.mxu0 0.0
  %1448 = vmatpush1.msra.mxu0 0.0
  %1449 = vmatprep.subr.mxu0 0.0
  %1450 = vmatpush1.msra.mxu0 0.0
  %1451 = vmatprep.subr.mxu0 0.0
  %1452 = vmatpush1.msra.mxu0 0.0
  %1453 = vmatprep.subr.mxu0 0.0
  %1454 = vmatpush1.msra.mxu0 0.0
  %1455 = vmatprep.subr.mxu0 0.0
  %1456 = vmatpush1.msra.mxu0 0.0
  %1457 = vmatprep.subr.mxu0 0.0
  %1458 = vmatpush1.msra.mxu0 0.0
  %1459 = vmatprep.subr.mxu0 0.0
  %1460 = vmatpush1.msra.mxu0 0.0
  %1461 = vmatprep.subr.mxu0 0.0
  %1462 = vmatpush1.msra.mxu0 0.0
  %1463 = vmatprep.subr.mxu0 0.0
  %1464 = vmatpush1.msra.mxu0 0.0
  %1465 = vmatprep.subr.mxu0 0.0
  %1466 = vmatpush1.msra.mxu0 0.0
  %1467 = vmatprep.subr.mxu0 0.0
  %1468 = vmatpush1.msra.mxu0 0.0
  %1469 = vmatprep.subr.mxu0 0.0
  %1470 = vmatpush1.msra.mxu0 0.0
  %1471 = vmatprep.subr.mxu0 0.0
  %1472 = vmatpush1.msra.mxu0 0.0
  %1473 = vmatprep.subr.mxu0 0.0
  %1474 = vmatpush1.msra.mxu0 0.0
  %1475 = vmatprep.subr.mxu0 0.0
  %1476 = vmatpush1.msra.mxu0 0.0
  %1477 = vmatprep.subr.mxu0 0.0
  %1478 = vmatpush1.msra.mxu0 0.0
  %1479 = vmatprep.mubr.f32.mxu0 0.0
  %v1480 = vand.u32 %v860, 4294901760
  %1481 = vmatmul.mubr.f32.gmra.mrb[0].mxu0 %v1480
  %v1482 = vpop.f32.mrb[0].mxu0
  %v1483 = vadd.f32 %v1350, %v1482
  %v1484 = vpop.f32.mrb[0].mxu0
  %1485 = vmatprep.mubr.f32.mxu0 0.0
  %v1486 = vand.u32 %v863, 4294901760
  %1487 = vmatmul.mubr.f32.gmra.mrb[0].mxu0 %v1486
  %v1488 = vpop.f32.mrb[0].mxu0
  %v1489 = vadd.f32 %v1358, %v1488
  %v1490 = vpop.f32.mrb[0].mxu0
  %1491 = vmatprep.mubr.f32.mxu0 0.0
  %v1492 = vand.u32 %v866, 4294901760
  %1493 = vmatmul.mubr.f32.gmra.mrb[0].mxu0 %v1492
  %v1494 = vpop.f32.mrb[0].mxu0
  %v1495 = vadd.f32 %v1366, %v1494
  %v1496 = vpop.f32.mrb[0].mxu0
  %1497 = vmatprep.mubr.f32.mxu0 0.0
  %v1498 = vand.u32 %v869, 4294901760
  %1499 = vmatmul.mubr.f32.gmra.mrb[0].mxu0 %v1498
  %v1500 = vpop.f32.mrb[0].mxu0
  %v1501 = vadd.f32 %v1374, %v1500
  %v1502 = vpop.f32.mrb[0].mxu0
  %1503 = vmatprep.mubr.f32.mxu0 0.0
  %v1504 = vand.u32 %v872, 4294901760
  %1505 = vmatmul.mubr.f32.gmra.mrb[0].mxu0 %v1504
  %v1506 = vpop.f32.mrb[0].mxu0
  %v1507 = vadd.f32 %v1382, %v1506
  %v1508 = vpop.f32.mrb[0].mxu0
  %1509 = vmatprep.mubr.f32.mxu0 0.0
  %v1510 = vand.u32 %v875, 4294901760
  %1511 = vmatmul.mubr.f32.gmra.mrb[0].mxu0 %v1510
  %v1512 = vpop.f32.mrb[0].mxu0
  %v1513 = vadd.f32 %v1390, %v1512
  %v1514 = vpop.f32.mrb[0].mxu0
  %1515 = vmatprep.mubr.f32.mxu0 0.0
  %v1516 = vand.u32 %v878, 4294901760
  %1517 = vmatmul.mubr.f32.gmra.mrb[0].mxu0 %v1516
  %v1518 = vpop.f32.mrb[0].mxu0
  %v1519 = vadd.f32 %v1398, %v1518
  %v1520 = vpop.f32.mrb[0].mxu0
  %1521 = vmatprep.mubr.f32.mxu0 0.0
  %v1522 = vand.u32 %v881, 4294901760
  %1523 = vmatmul.mubr.f32.gmra.mrb[0].mxu0 %v1522
  %v1524 = vpop.f32.mrb[0].mxu0
  %v1525 = vadd.f32 %v1406, %v1524
  %v1526 = vpop.f32.mrb[0].mxu0
  %1527 = vdwg.mxu0
  %1528 = vmatprep.subr.mxu0 0.0
  %v1529 = vand.u32 %v857, 4294901760
  %1530 = vmatpush1.msra.mxu0 %v1529
  %1531 = vmatprep.subr.mxu0 0.0
  %v1532 = vand.u32 %v858, 4294901760
  %1533 = vmatpush1.msra.mxu0 %v1532
  %1534 = vmatprep.subr.mxu0 0.0
  %1535 = vmatpush1.msra.mxu0 0.0
  %1536 = vmatprep.subr.mxu0 0.0
  %1537 = vmatpush1.msra.mxu0 0.0
  %1538 = vmatprep.subr.mxu0 0.0
  %1539 = vmatpush1.msra.mxu0 0.0
  %1540 = vmatprep.subr.mxu0 0.0
  %1541 = vmatpush1.msra.mxu0 0.0
  %1542 = vmatprep.subr.mxu0 0.0
  %1543 = vmatpush1.msra.mxu0 0.0
  %1544 = vmatprep.subr.mxu0 0.0
  %1545 = vmatpush1.msra.mxu0 0.0
  %1546 = vmatprep.subr.mxu0 0.0
  %1547 = vmatpush1.msra.mxu0 0.0
  %1548 = vmatprep.subr.mxu0 0.0
  %1549 = vmatpush1.msra.mxu0 0.0
  %1550 = vmatprep.subr.mxu0 0.0
  %1551 = vmatpush1.msra.mxu0 0.0
  %1552 = vmatprep.subr.mxu0 0.0
  %1553 = vmatpush1.msra.mxu0 0.0
  %1554 = vmatprep.subr.mxu0 0.0
  %1555 = vmatpush1.msra.mxu0 0.0
  %1556 = vmatprep.subr.mxu0 0.0
  %1557 = vmatpush1.msra.mxu0 0.0
  %1558 = vmatprep.subr.mxu0 0.0
  %1559 = vmatpush1.msra.mxu0 0.0
  %1560 = vmatprep.subr.mxu0 0.0
  %1561 = vmatpush1.msra.mxu0 0.0
  %1562 = vmatprep.subr.mxu0 0.0
  %1563 = vmatpush1.msra.mxu0 0.0
  %1564 = vmatprep.subr.mxu0 0.0
  %1565 = vmatpush1.msra.mxu0 0.0
  %1566 = vmatprep.subr.mxu0 0.0
  %1567 = vmatpush1.msra.mxu0 0.0
  %1568 = vmatprep.subr.mxu0 0.0
  %1569 = vmatpush1.msra.mxu0 0.0
  %1570 = vmatprep.subr.mxu0 0.0
  %1571 = vmatpush1.msra.mxu0 0.0
  %1572 = vmatprep.subr.mxu0 0.0
  %1573 = vmatpush1.msra.mxu0 0.0
  %1574 = vmatprep.subr.mxu0 0.0
  %1575 = vmatpush1.msra.mxu0 0.0
  %1576 = vmatprep.subr.mxu0 0.0
  %1577 = vmatpush1.msra.mxu0 0.0
  %1578 = vmatprep.subr.mxu0 0.0
  %1579 = vmatpush1.msra.mxu0 0.0
  %1580 = vmatprep.subr.mxu0 0.0
  %1581 = vmatpush1.msra.mxu0 0.0
  %1582 = vmatprep.subr.mxu0 0.0
  %1583 = vmatpush1.msra.mxu0 0.0
  %1584 = vmatprep.subr.mxu0 0.0
  %1585 = vmatpush1.msra.mxu0 0.0
  %1586 = vmatprep.subr.mxu0 0.0
  %1587 = vmatpush1.msra.mxu0 0.0
  %1588 = vmatprep.subr.mxu0 0.0
  %1589 = vmatpush1.msra.mxu0 0.0
  %1590 = vmatprep.subr.mxu0 0.0
  %1591 = vmatpush1.msra.mxu0 0.0
  %1592 = vmatprep.subr.mxu0 0.0
  %1593 = vmatpush1.msra.mxu0 0.0
  %1594 = vmatprep.mubr.f32.mxu0 0.0
  %v1595 = vand.u32 %v860, 4294901760
  %1596 = vmatmul.mubr.f32.gmra.mrb[0].mxu0 %v1595
  %v1597 = vpop.f32.mrb[0].mxu0
  %v1598 = vadd.f32 %v1483, %v1597
  %v1599 = vpop.f32.mrb[0].mxu0
  %1600 = vmatprep.mubr.f32.mxu0 0.0
  %v1601 = vand.u32 %v863, 4294901760
  %1602 = vmatmul.mubr.f32.gmra.mrb[0].mxu0 %v1601
  %v1603 = vpop.f32.mrb[0].mxu0
  %v1604 = vadd.f32 %v1489, %v1603
  %v1605 = vpop.f32.mrb[0].mxu0
  %1606 = vmatprep.mubr.f32.mxu0 0.0
  %v1607 = vand.u32 %v866, 4294901760
  %1608 = vmatmul.mubr.f32.gmra.mrb[0].mxu0 %v1607
  %v1609 = vpop.f32.mrb[0].mxu0
  %v1610 = vadd.f32 %v1495, %v1609
  %v1611 = vpop.f32.mrb[0].mxu0
  %1612 = vmatprep.mubr.f32.mxu0 0.0
  %v1613 = vand.u32 %v869, 4294901760
  %1614 = vmatmul.mubr.f32.gmra.mrb[0].mxu0 %v1613
  %v1615 = vpop.f32.mrb[0].mxu0
  %v1616 = vadd.f32 %v1501, %v1615
  %v1617 = vpop.f32.mrb[0].mxu0
  %1618 = vmatprep.mubr.f32.mxu0 0.0
  %v1619 = vand.u32 %v872, 4294901760
  %1620 = vmatmul.mubr.f32.gmra.mrb[0].mxu0 %v1619
  %v1621 = vpop.f32.mrb[0].mxu0
  %v1622 = vadd.f32 %v1507, %v1621
  %v1623 = vpop.f32.mrb[0].mxu0
  %1624 = vmatprep.mubr.f32.mxu0 0.0
  %v1625 = vand.u32 %v875, 4294901760
  %1626 = vmatmul.mubr.f32.gmra.mrb[0].mxu0 %v1625
  %v1627 = vpop.f32.mrb[0].mxu0
  %v1628 = vadd.f32 %v1513, %v1627
  %v1629 = vpop.f32.mrb[0].mxu0
  %1630 = vmatprep.mubr.f32.mxu0 0.0
  %v1631 = vand.u32 %v878, 4294901760
  %1632 = vmatmul.mubr.f32.gmra.mrb[0].mxu0 %v1631
  %v1633 = vpop.f32.mrb[0].mxu0
  %v1634 = vadd.f32 %v1519, %v1633
  %v1635 = vpop.f32.mrb[0].mxu0
  %1636 = vmatprep.mubr.f32.mxu0 0.0
  %v1637 = vand.u32 %v881, 4294901760
  %1638 = vmatmul.mubr.f32.gmra.mrb[0].mxu0 %v1637
  %v1639 = vpop.f32.mrb[0].mxu0
  %v1640 = vadd.f32 %v1525, %v1639
  %v1641 = vpop.f32.mrb[0].mxu0
  %1642 = vdwg.mxu0
  %1651 = vrot.lane.b32.xlu0 %v1598, 120
  %v1652 = vpop.permute.xlu0 %1651
  %1653 = vrot.lane.b32.xlu0 %v1604, 120
  %v1654 = vpop.permute.xlu0 %1653
  %1655 = vrot.lane.b32.xlu0 %v1610, 120
  %v1656 = vpop.permute.xlu0 %1655
  %1657 = vrot.lane.b32.xlu0 %v1616, 120
  %v1658 = vpop.permute.xlu0 %1657
  %1659 = vrot.lane.b32.xlu0 %v1622, 120
  %v1660 = vpop.permute.xlu0 %1659
  %1661 = vrot.lane.b32.xlu0 %v1628, 120
  %v1662 = vpop.permute.xlu0 %1661
  %1663 = vrot.lane.b32.xlu0 %v1634, 120
  %v1664 = vpop.permute.xlu0 %1663
  %1665 = vrot.lane.b32.xlu0 %v1640, 120
  %v1666 = vpop.permute.xlu0 %1665
  %v1675 = vmax.f32 %v1598, %v1652
  %v1676 = vmax.f32 %v1604, %v1654
  %v1677 = vmax.f32 %v1610, %v1656
  %v1678 = vmax.f32 %v1616, %v1658
  %v1679 = vmax.f32 %v1622, %v1660
  %v1680 = vmax.f32 %v1628, %v1662
  %v1681 = vmax.f32 %v1634, %v1664
  %v1682 = vmax.f32 %v1640, %v1666
  %v1683 = vmul.f32 %v812, 0.125
  %v1684 = vmul.f32 %v818, 0.125
  %v1685 = vmul.f32 %v824, 0.125
  %v1686 = vmul.f32 %v830, 0.125
  %v1687 = vmul.f32 %v836, 0.125
  %v1688 = vmul.f32 %v842, 0.125
  %v1689 = vmul.f32 %v848, 0.125
  %v1690 = vmul.f32 %v854, 0.125
  %v1691 = vmul.f32 %v1675, 0.5
  %v1692 = vmul.f32 %v1676, 0.5
  %v1693 = vmul.f32 %v1677, 0.5
  %v1694 = vmul.f32 %v1678, 0.5
  %v1695 = vmul.f32 %v1679, 0.5
  %v1696 = vmul.f32 %v1680, 0.5
  %v1697 = vmul.f32 %v1681, 0.5
  %v1698 = vmul.f32 %v1682, 0.5
  %v1699 = vadd.f32 %v1683, %v1691
  %v1700 = vadd.f32 %v1684, %v1692
  %v1701 = vadd.f32 %v1685, %v1693
  %v1702 = vadd.f32 %v1686, %v1694
  %v1703 = vadd.f32 %v1687, %v1695
  %v1704 = vadd.f32 %v1688, %v1696
  %v1705 = vadd.f32 %v1689, %v1697
  %v1706 = vadd.f32 %v1690, %v1698
  %v1707 = vld [vmem:[%s4] sm:$0xff]
  %v1708 = vld [vmem:[%s5] sm:$0x1]
  %v1709 = vld [vmem:[%s1] sm:$0xff]
  %v1710 = vld [vmem:[%s1 + $0x8] sm:$0xff]
  %v1711 = vld [vmem:[%s1 + $0x10] sm:$0xff]
  %v1712 = vld [vmem:[%s1 + $0x18] sm:$0xff]
  %v1713 = vld [vmem:[%s1 + $0x20] sm:$0xff]
  %v1714 = vld [vmem:[%s1 + $0x28] sm:$0xff]
  %v1715 = vld [vmem:[%s1 + $0x30] sm:$0xff]
  %v1716 = vld [vmem:[%s1 + $0x38] sm:$0xff]
  %v1718 = vlaneseq
  %v1719 = vshrl.u32 %v1718, 7
  %v1720 = vsub.s32 0, %v1719
  %v1721 = vrot.slane %v1708, %v1720
  %v1723 = vmul.f32 %v1721, %v1709
  %v1724 = vmul.f32 %v1721, %v1710
  %v1725 = vmul.f32 %v1721, %v1711
  %v1726 = vmul.f32 %v1721, %v1712
  %v1727 = vmul.f32 %v1721, %v1713
  %v1728 = vmul.f32 %v1721, %v1714
  %v1729 = vmul.f32 %v1721, %v1715
  %v1730 = vmul.f32 %v1721, %v1716
  %vm1731 = vcmask 64512
  %v1733 = vsel %vm1731, %v1699, 0
  %v1736 = vsel %vm1731, %v1700, 0
  %v1739 = vsel %vm1731, %v1701, 0
  %v1742 = vsel %vm1731, %v1702, 0
  %v1745 = vsel %vm1731, %v1703, 0
  %v1748 = vsel %vm1731, %v1704, 0
  %v1751 = vsel %vm1731, %v1705, 0
  %v1754 = vsel %vm1731, %v1706, 0
  %1756 = vmatprep.subr.mxu0 0.0
  %v1757 = vand.u32 %v1707, 4294901760
  %1758 = vmatpush1.msra.mxu0 %v1757
  %1759 = vmatprep.subr.mxu0 0.0
  %1760 = vmatpush1.msra.mxu0 0.0
  %1761 = vmatprep.subr.mxu0 0.0
  %1762 = vmatpush1.msra.mxu0 0.0
  %1763 = vmatprep.subr.mxu0 0.0
  %1764 = vmatpush1.msra.mxu0 0.0
  %1765 = vmatprep.subr.mxu0 0.0
  %1766 = vmatpush1.msra.mxu0 0.0
  %1767 = vmatprep.subr.mxu0 0.0
  %1768 = vmatpush1.msra.mxu0 0.0
  %1769 = vmatprep.subr.mxu0 0.0
  %1770 = vmatpush1.msra.mxu0 0.0
  %1771 = vmatprep.subr.mxu0 0.0
  %1772 = vmatpush1.msra.mxu0 0.0
  %1773 = vmatprep.subr.mxu0 0.0
  %1774 = vmatpush1.msra.mxu0 0.0
  %1775 = vmatprep.subr.mxu0 0.0
  %1776 = vmatpush1.msra.mxu0 0.0
  %1777 = vmatprep.subr.mxu0 0.0
  %1778 = vmatpush1.msra.mxu0 0.0
  %1779 = vmatprep.subr.mxu0 0.0
  %1780 = vmatpush1.msra.mxu0 0.0
  %1781 = vmatprep.subr.mxu0 0.0
  %1782 = vmatpush1.msra.mxu0 0.0
  %1783 = vmatprep.subr.mxu0 0.0
  %1784 = vmatpush1.msra.mxu0 0.0
  %1785 = vmatprep.subr.mxu0 0.0
  %1786 = vmatpush1.msra.mxu0 0.0
  %1787 = vmatprep.subr.mxu0 0.0
  %1788 = vmatpush1.msra.mxu0 0.0
  %1789 = vmatprep.subr.mxu0 0.0
  %1790 = vmatpush1.msra.mxu0 0.0
  %1791 = vmatprep.subr.mxu0 0.0
  %1792 = vmatpush1.msra.mxu0 0.0
  %1793 = vmatprep.subr.mxu0 0.0
  %1794 = vmatpush1.msra.mxu0 0.0
  %1795 = vmatprep.subr.mxu0 0.0
  %1796 = vmatpush1.msra.mxu0 0.0
  %1797 = vmatprep.subr.mxu0 0.0
  %1798 = vmatpush1.msra.mxu0 0.0
  %1799 = vmatprep.subr.mxu0 0.0
  %1800 = vmatpush1.msra.mxu0 0.0
  %1801 = vmatprep.subr.mxu0 0.0
  %1802 = vmatpush1.msra.mxu0 0.0
  %1803 = vmatprep.subr.mxu0 0.0
  %1804 = vmatpush1.msra.mxu0 0.0
  %1805 = vmatprep.subr.mxu0 0.0
  %1806 = vmatpush1.msra.mxu0 0.0
  %1807 = vmatprep.subr.mxu0 0.0
  %1808 = vmatpush1.msra.mxu0 0.0
  %1809 = vmatprep.subr.mxu0 0.0
  %1810 = vmatpush1.msra.mxu0 0.0
  %1811 = vmatprep.subr.mxu0 0.0
  %1812 = vmatpush1.msra.mxu0 0.0
  %1813 = vmatprep.subr.mxu0 0.0
  %1814 = vmatpush1.msra.mxu0 0.0
  %1815 = vmatprep.subr.mxu0 0.0
  %1816 = vmatpush1.msra.mxu0 0.0
  %1817 = vmatprep.subr.mxu0 0.0
  %1818 = vmatpush1.msra.mxu0 0.0
  %1819 = vmatprep.subr.mxu0 0.0
  %1820 = vmatpush1.msra.mxu0 0.0
  %1821 = vmatprep.mubr.f32.mxu0 0.0
  %v1822 = vand.u32 %v1733, 4294901760
  %v1823 = vsub.f32 %v1733, %v1822
  %v1824 = vand.u32 %v1823, 4294901760
  %v1825 = vsub.f32 %v1823, %v1824
  %v1826 = vand.u32 %v1825, 4294901760
  %1827 = vmatmul.mubr.f32.gmra.mrb[0].mxu0 %v1826
  %v1828 = vpop.f32.mrb[0].mxu0
  %v1829 = vadd.f32 %v1723, %v1828
  %v1830 = vpop.f32.mrb[0].mxu0
  %1831 = vmatprep.mubr.f32.mxu0 0.0
  %v1832 = vand.u32 %v1736, 4294901760
  %v1833 = vsub.f32 %v1736, %v1832
  %v1834 = vand.u32 %v1833, 4294901760
  %v1835 = vsub.f32 %v1833, %v1834
  %v1836 = vand.u32 %v1835, 4294901760
  %1837 = vmatmul.mubr.f32.gmra.mrb[0].mxu0 %v1836
  %v1838 = vpop.f32.mrb[0].mxu0
  %v1839 = vadd.f32 %v1724, %v1838
  %v1840 = vpop.f32.mrb[0].mxu0
  %1841 = vmatprep.mubr.f32.mxu0 0.0
  %v1842 = vand.u32 %v1739, 4294901760
  %v1843 = vsub.f32 %v1739, %v1842
  %v1844 = vand.u32 %v1843, 4294901760
  %v1845 = vsub.f32 %v1843, %v1844
  %v1846 = vand.u32 %v1845, 4294901760
  %1847 = vmatmul.mubr.f32.gmra.mrb[0].mxu0 %v1846
  %v1848 = vpop.f32.mrb[0].mxu0
  %v1849 = vadd.f32 %v1725, %v1848
  %v1850 = vpop.f32.mrb[0].mxu0
  %1851 = vmatprep.mubr.f32.mxu0 0.0
  %v1852 = vand.u32 %v1742, 4294901760
  %v1853 = vsub.f32 %v1742, %v1852
  %v1854 = vand.u32 %v1853, 4294901760
  %v1855 = vsub.f32 %v1853, %v1854
  %v1856 = vand.u32 %v1855, 4294901760
  %1857 = vmatmul.mubr.f32.gmra.mrb[0].mxu0 %v1856
  %v1858 = vpop.f32.mrb[0].mxu0
  %v1859 = vadd.f32 %v1726, %v1858
  %v1860 = vpop.f32.mrb[0].mxu0
  %1861 = vmatprep.mubr.f32.mxu0 0.0
  %v1862 = vand.u32 %v1745, 4294901760
  %v1863 = vsub.f32 %v1745, %v1862
  %v1864 = vand.u32 %v1863, 4294901760
  %v1865 = vsub.f32 %v1863, %v1864
  %v1866 = vand.u32 %v1865, 4294901760
  %1867 = vmatmul.mubr.f32.gmra.mrb[0].mxu0 %v1866
  %v1868 = vpop.f32.mrb[0].mxu0
  %v1869 = vadd.f32 %v1727, %v1868
  %v1870 = vpop.f32.mrb[0].mxu0
  %1871 = vmatprep.mubr.f32.mxu0 0.0
  %v1872 = vand.u32 %v1748, 4294901760
  %v1873 = vsub.f32 %v1748, %v1872
  %v1874 = vand.u32 %v1873, 4294901760
  %v1875 = vsub.f32 %v1873, %v1874
  %v1876 = vand.u32 %v1875, 4294901760
  %1877 = vmatmul.mubr.f32.gmra.mrb[0].mxu0 %v1876
  %v1878 = vpop.f32.mrb[0].mxu0
  %v1879 = vadd.f32 %v1728, %v1878
  %v1880 = vpop.f32.mrb[0].mxu0
  %1881 = vmatprep.mubr.f32.mxu0 0.0
  %v1882 = vand.u32 %v1751, 4294901760
  %v1883 = vsub.f32 %v1751, %v1882
  %v1884 = vand.u32 %v1883, 4294901760
  %v1885 = vsub.f32 %v1883, %v1884
  %v1886 = vand.u32 %v1885, 4294901760
  %1887 = vmatmul.mubr.f32.gmra.mrb[0].mxu0 %v1886
  %v1888 = vpop.f32.mrb[0].mxu0
  %v1889 = vadd.f32 %v1729, %v1888
  %v1890 = vpop.f32.mrb[0].mxu0
  %1891 = vmatprep.mubr.f32.mxu0 0.0
  %v1892 = vand.u32 %v1754, 4294901760
  %v1893 = vsub.f32 %v1754, %v1892
  %v1894 = vand.u32 %v1893, 4294901760
  %v1895 = vsub.f32 %v1893, %v1894
  %v1896 = vand.u32 %v1895, 4294901760
  %1897 = vmatmul.mubr.f32.gmra.mrb[0].mxu0 %v1896
  %v1898 = vpop.f32.mrb[0].mxu0
  %v1899 = vadd.f32 %v1730, %v1898
  %v1900 = vpop.f32.mrb[0].mxu0
  %1901 = vdwg.mxu0
  %1902 = vmatprep.subr.mxu0 0.0
  %v1903 = vand.u32 %v1707, 4294901760
  %v1904 = vsub.f32 %v1707, %v1903
  %v1905 = vand.u32 %v1904, 4294901760
  %v1906 = vsub.f32 %v1904, %v1905
  %v1907 = vand.u32 %v1906, 4294901760
  %1908 = vmatpush1.msra.mxu0 %v1907
  %1909 = vmatprep.subr.mxu0 0.0
  %1910 = vmatpush1.msra.mxu0 0.0
  %1911 = vmatprep.subr.mxu0 0.0
  %1912 = vmatpush1.msra.mxu0 0.0
  %1913 = vmatprep.subr.mxu0 0.0
  %1914 = vmatpush1.msra.mxu0 0.0
  %1915 = vmatprep.subr.mxu0 0.0
  %1916 = vmatpush1.msra.mxu0 0.0
  %1917 = vmatprep.subr.mxu0 0.0
  %1918 = vmatpush1.msra.mxu0 0.0
  %1919 = vmatprep.subr.mxu0 0.0
  %1920 = vmatpush1.msra.mxu0 0.0
  %1921 = vmatprep.subr.mxu0 0.0
  %1922 = vmatpush1.msra.mxu0 0.0
  %1923 = vmatprep.subr.mxu0 0.0
  %1924 = vmatpush1.msra.mxu0 0.0
  %1925 = vmatprep.subr.mxu0 0.0
  %1926 = vmatpush1.msra.mxu0 0.0
  %1927 = vmatprep.subr.mxu0 0.0
  %1928 = vmatpush1.msra.mxu0 0.0
  %1929 = vmatprep.subr.mxu0 0.0
  %1930 = vmatpush1.msra.mxu0 0.0
  %1931 = vmatprep.subr.mxu0 0.0
  %1932 = vmatpush1.msra.mxu0 0.0
  %1933 = vmatprep.subr.mxu0 0.0
  %1934 = vmatpush1.msra.mxu0 0.0
  %1935 = vmatprep.subr.mxu0 0.0
  %1936 = vmatpush1.msra.mxu0 0.0
  %1937 = vmatprep.subr.mxu0 0.0
  %1938 = vmatpush1.msra.mxu0 0.0
  %1939 = vmatprep.subr.mxu0 0.0
  %1940 = vmatpush1.msra.mxu0 0.0
  %1941 = vmatprep.subr.mxu0 0.0
  %1942 = vmatpush1.msra.mxu0 0.0
  %1943 = vmatprep.subr.mxu0 0.0
  %1944 = vmatpush1.msra.mxu0 0.0
  %1945 = vmatprep.subr.mxu0 0.0
  %1946 = vmatpush1.msra.mxu0 0.0
  %1947 = vmatprep.subr.mxu0 0.0
  %1948 = vmatpush1.msra.mxu0 0.0
  %1949 = vmatprep.subr.mxu0 0.0
  %1950 = vmatpush1.msra.mxu0 0.0
  %1951 = vmatprep.subr.mxu0 0.0
  %1952 = vmatpush1.msra.mxu0 0.0
  %1953 = vmatprep.subr.mxu0 0.0
  %1954 = vmatpush1.msra.mxu0 0.0
  %1955 = vmatprep.subr.mxu0 0.0
  %1956 = vmatpush1.msra.mxu0 0.0
  %1957 = vmatprep.subr.mxu0 0.0
  %1958 = vmatpush1.msra.mxu0 0.0
  %1959 = vmatprep.subr.mxu0 0.0
  %1960 = vmatpush1.msra.mxu0 0.0
  %1961 = vmatprep.subr.mxu0 0.0
  %1962 = vmatpush1.msra.mxu0 0.0
  %1963 = vmatprep.subr.mxu0 0.0
  %1964 = vmatpush1.msra.mxu0 0.0
  %1965 = vmatprep.subr.mxu0 0.0
  %1966 = vmatpush1.msra.mxu0 0.0
  %1967 = vmatprep.subr.mxu0 0.0
  %1968 = vmatpush1.msra.mxu0 0.0
  %1969 = vmatprep.subr.mxu0 0.0
  %1970 = vmatpush1.msra.mxu0 0.0
  %1971 = vmatprep.mubr.f32.mxu0 0.0
  %v1972 = vand.u32 %v1733, 4294901760
  %1973 = vmatmul.mubr.f32.gmra.mrb[0].mxu0 %v1972
  %v1974 = vpop.f32.mrb[0].mxu0
  %v1975 = vadd.f32 %v1829, %v1974
  %v1976 = vpop.f32.mrb[0].mxu0
  %1977 = vmatprep.mubr.f32.mxu0 0.0
  %v1978 = vand.u32 %v1736, 4294901760
  %1979 = vmatmul.mubr.f32.gmra.mrb[0].mxu0 %v1978
  %v1980 = vpop.f32.mrb[0].mxu0
  %v1981 = vadd.f32 %v1839, %v1980
  %v1982 = vpop.f32.mrb[0].mxu0
  %1983 = vmatprep.mubr.f32.mxu0 0.0
  %v1984 = vand.u32 %v1739, 4294901760
  %1985 = vmatmul.mubr.f32.gmra.mrb[0].mxu0 %v1984
  %v1986 = vpop.f32.mrb[0].mxu0
  %v1987 = vadd.f32 %v1849, %v1986
  %v1988 = vpop.f32.mrb[0].mxu0
  %1989 = vmatprep.mubr.f32.mxu0 0.0
  %v1990 = vand.u32 %v1742, 4294901760
  %1991 = vmatmul.mubr.f32.gmra.mrb[0].mxu0 %v1990
  %v1992 = vpop.f32.mrb[0].mxu0
  %v1993 = vadd.f32 %v1859, %v1992
  %v1994 = vpop.f32.mrb[0].mxu0
  %1995 = vmatprep.mubr.f32.mxu0 0.0
  %v1996 = vand.u32 %v1745, 4294901760
  %1997 = vmatmul.mubr.f32.gmra.mrb[0].mxu0 %v1996
  %v1998 = vpop.f32.mrb[0].mxu0
  %v1999 = vadd.f32 %v1869, %v1998
  %v2000 = vpop.f32.mrb[0].mxu0
  %2001 = vmatprep.mubr.f32.mxu0 0.0
  %v2002 = vand.u32 %v1748, 4294901760
  %2003 = vmatmul.mubr.f32.gmra.mrb[0].mxu0 %v2002
  %v2004 = vpop.f32.mrb[0].mxu0
  %v2005 = vadd.f32 %v1879, %v2004
  %v2006 = vpop.f32.mrb[0].mxu0
  %2007 = vmatprep.mubr.f32.mxu0 0.0
  %v2008 = vand.u32 %v1751, 4294901760
  %2009 = vmatmul.mubr.f32.gmra.mrb[0].mxu0 %v2008
  %v2010 = vpop.f32.mrb[0].mxu0
  %v2011 = vadd.f32 %v1889, %v2010
  %v2012 = vpop.f32.mrb[0].mxu0
  %2013 = vmatprep.mubr.f32.mxu0 0.0
  %v2014 = vand.u32 %v1754, 4294901760
  %2015 = vmatmul.mubr.f32.gmra.mrb[0].mxu0 %v2014
  %v2016 = vpop.f32.mrb[0].mxu0
  %v2017 = vadd.f32 %v1899, %v2016
  %v2018 = vpop.f32.mrb[0].mxu0
  %2019 = vdwg.mxu0
  %2020 = vmatprep.subr.mxu0 0.0
  %v2021 = vand.u32 %v1707, 4294901760
  %v2022 = vsub.f32 %v1707, %v2021
  %2023 = vmatpush1.msra.mxu0 %v2022
  %2024 = vmatprep.subr.mxu0 0.0
  %2025 = vmatpush1.msra.mxu0 0.0
  %2026 = vmatprep.subr.mxu0 0.0
  %2027 = vmatpush1.msra.mxu0 0.0
  %2028 = vmatprep.subr.mxu0 0.0
  %2029 = vmatpush1.msra.mxu0 0.0
  %2030 = vmatprep.subr.mxu0 0.0
  %2031 = vmatpush1.msra.mxu0 0.0
  %2032 = vmatprep.subr.mxu0 0.0
  %2033 = vmatpush1.msra.mxu0 0.0
  %2034 = vmatprep.subr.mxu0 0.0
  %2035 = vmatpush1.msra.mxu0 0.0
  %2036 = vmatprep.subr.mxu0 0.0
  %2037 = vmatpush1.msra.mxu0 0.0
  %2038 = vmatprep.subr.mxu0 0.0
  %2039 = vmatpush1.msra.mxu0 0.0
  %2040 = vmatprep.subr.mxu0 0.0
  %2041 = vmatpush1.msra.mxu0 0.0
  %2042 = vmatprep.subr.mxu0 0.0
  %2043 = vmatpush1.msra.mxu0 0.0
  %2044 = vmatprep.subr.mxu0 0.0
  %2045 = vmatpush1.msra.mxu0 0.0
  %2046 = vmatprep.subr.mxu0 0.0
  %2047 = vmatpush1.msra.mxu0 0.0
  %2048 = vmatprep.subr.mxu0 0.0
  %2049 = vmatpush1.msra.mxu0 0.0
  %2050 = vmatprep.subr.mxu0 0.0
  %2051 = vmatpush1.msra.mxu0 0.0
  %2052 = vmatprep.subr.mxu0 0.0
  %2053 = vmatpush1.msra.mxu0 0.0
  %2054 = vmatprep.subr.mxu0 0.0
  %2055 = vmatpush1.msra.mxu0 0.0
  %2056 = vmatprep.subr.mxu0 0.0
  %2057 = vmatpush1.msra.mxu0 0.0
  %2058 = vmatprep.subr.mxu0 0.0
  %2059 = vmatpush1.msra.mxu0 0.0
  %2060 = vmatprep.subr.mxu0 0.0
  %2061 = vmatpush1.msra.mxu0 0.0
  %2062 = vmatprep.subr.mxu0 0.0
  %2063 = vmatpush1.msra.mxu0 0.0
  %2064 = vmatprep.subr.mxu0 0.0
  %2065 = vmatpush1.msra.mxu0 0.0
  %2066 = vmatprep.subr.mxu0 0.0
  %2067 = vmatpush1.msra.mxu0 0.0
  %2068 = vmatprep.subr.mxu0 0.0
  %2069 = vmatpush1.msra.mxu0 0.0
  %2070 = vmatprep.subr.mxu0 0.0
  %2071 = vmatpush1.msra.mxu0 0.0
  %2072 = vmatprep.subr.mxu0 0.0
  %2073 = vmatpush1.msra.mxu0 0.0
  %2074 = vmatprep.subr.mxu0 0.0
  %2075 = vmatpush1.msra.mxu0 0.0
  %2076 = vmatprep.subr.mxu0 0.0
  %2077 = vmatpush1.msra.mxu0 0.0
  %2078 = vmatprep.subr.mxu0 0.0
  %2079 = vmatpush1.msra.mxu0 0.0
  %2080 = vmatprep.subr.mxu0 0.0
  %2081 = vmatpush1.msra.mxu0 0.0
  %2082 = vmatprep.subr.mxu0 0.0
  %2083 = vmatpush1.msra.mxu0 0.0
  %2084 = vmatprep.subr.mxu0 0.0
  %2085 = vmatpush1.msra.mxu0 0.0
  %2086 = vmatprep.mubr.f32.mxu0 0.0
  %v2087 = vand.u32 %v1733, 4294901760
  %v2088 = vsub.f32 %v1733, %v2087
  %2089 = vmatmul.mubr.f32.gmra.mrb[0].mxu0 %v2088
  %v2090 = vpop.f32.mrb[0].mxu0
  %v2091 = vadd.f32 %v1975, %v2090
  %v2092 = vpop.f32.mrb[0].mxu0
  %2093 = vmatprep.mubr.f32.mxu0 0.0
  %v2094 = vand.u32 %v1736, 4294901760
  %v2095 = vsub.f32 %v1736, %v2094
  %2096 = vmatmul.mubr.f32.gmra.mrb[0].mxu0 %v2095
  %v2097 = vpop.f32.mrb[0].mxu0
  %v2098 = vadd.f32 %v1981, %v2097
  %v2099 = vpop.f32.mrb[0].mxu0
  %2100 = vmatprep.mubr.f32.mxu0 0.0
  %v2101 = vand.u32 %v1739, 4294901760
  %v2102 = vsub.f32 %v1739, %v2101
  %2103 = vmatmul.mubr.f32.gmra.mrb[0].mxu0 %v2102
  %v2104 = vpop.f32.mrb[0].mxu0
  %v2105 = vadd.f32 %v1987, %v2104
  %v2106 = vpop.f32.mrb[0].mxu0
  %2107 = vmatprep.mubr.f32.mxu0 0.0
  %v2108 = vand.u32 %v1742, 4294901760
  %v2109 = vsub.f32 %v1742, %v2108
  %2110 = vmatmul.mubr.f32.gmra.mrb[0].mxu0 %v2109
  %v2111 = vpop.f32.mrb[0].mxu0
  %v2112 = vadd.f32 %v1993, %v2111
  %v2113 = vpop.f32.mrb[0].mxu0
  %2114 = vmatprep.mubr.f32.mxu0 0.0
  %v2115 = vand.u32 %v1745, 4294901760
  %v2116 = vsub.f32 %v1745, %v2115
  %2117 = vmatmul.mubr.f32.gmra.mrb[0].mxu0 %v2116
  %v2118 = vpop.f32.mrb[0].mxu0
  %v2119 = vadd.f32 %v1999, %v2118
  %v2120 = vpop.f32.mrb[0].mxu0
  %2121 = vmatprep.mubr.f32.mxu0 0.0
  %v2122 = vand.u32 %v1748, 4294901760
  %v2123 = vsub.f32 %v1748, %v2122
  %2124 = vmatmul.mubr.f32.gmra.mrb[0].mxu0 %v2123
  %v2125 = vpop.f32.mrb[0].mxu0
  %v2126 = vadd.f32 %v2005, %v2125
  %v2127 = vpop.f32.mrb[0].mxu0
  %2128 = vmatprep.mubr.f32.mxu0 0.0
  %v2129 = vand.u32 %v1751, 4294901760
  %v2130 = vsub.f32 %v1751, %v2129
  %2131 = vmatmul.mubr.f32.gmra.mrb[0].mxu0 %v2130
  %v2132 = vpop.f32.mrb[0].mxu0
  %v2133 = vadd.f32 %v2011, %v2132
  %v2134 = vpop.f32.mrb[0].mxu0
  %2135 = vmatprep.mubr.f32.mxu0 0.0
  %v2136 = vand.u32 %v1754, 4294901760
  %v2137 = vsub.f32 %v1754, %v2136
  %2138 = vmatmul.mubr.f32.gmra.mrb[0].mxu0 %v2137
  %v2139 = vpop.f32.mrb[0].mxu0
  %v2140 = vadd.f32 %v2017, %v2139
  %v2141 = vpop.f32.mrb[0].mxu0
  %2142 = vdwg.mxu0
  %2143 = vmatprep.subr.mxu0 0.0
  %v2144 = vand.u32 %v1707, 4294901760
  %2145 = vmatpush1.msra.mxu0 %v2144
  %2146 = vmatprep.subr.mxu0 0.0
  %2147 = vmatpush1.msra.mxu0 0.0
  %2148 = vmatprep.subr.mxu0 0.0
  %2149 = vmatpush1.msra.mxu0 0.0
  %2150 = vmatprep.subr.mxu0 0.0
  %2151 = vmatpush1.msra.mxu0 0.0
  %2152 = vmatprep.subr.mxu0 0.0
  %2153 = vmatpush1.msra.mxu0 0.0
  %2154 = vmatprep.subr.mxu0 0.0
  %2155 = vmatpush1.msra.mxu0 0.0
  %2156 = vmatprep.subr.mxu0 0.0
  %2157 = vmatpush1.msra.mxu0 0.0
  %2158 = vmatprep.subr.mxu0 0.0
  %2159 = vmatpush1.msra.mxu0 0.0
  %2160 = vmatprep.subr.mxu0 0.0
  %2161 = vmatpush1.msra.mxu0 0.0
  %2162 = vmatprep.subr.mxu0 0.0
  %2163 = vmatpush1.msra.mxu0 0.0
  %2164 = vmatprep.subr.mxu0 0.0
  %2165 = vmatpush1.msra.mxu0 0.0
  %2166 = vmatprep.subr.mxu0 0.0
  %2167 = vmatpush1.msra.mxu0 0.0
  %2168 = vmatprep.subr.mxu0 0.0
  %2169 = vmatpush1.msra.mxu0 0.0
  %2170 = vmatprep.subr.mxu0 0.0
  %2171 = vmatpush1.msra.mxu0 0.0
  %2172 = vmatprep.subr.mxu0 0.0
  %2173 = vmatpush1.msra.mxu0 0.0
  %2174 = vmatprep.subr.mxu0 0.0
  %2175 = vmatpush1.msra.mxu0 0.0
  %2176 = vmatprep.subr.mxu0 0.0
  %2177 = vmatpush1.msra.mxu0 0.0
  %2178 = vmatprep.subr.mxu0 0.0
  %2179 = vmatpush1.msra.mxu0 0.0
  %2180 = vmatprep.subr.mxu0 0.0
  %2181 = vmatpush1.msra.mxu0 0.0
  %2182 = vmatprep.subr.mxu0 0.0
  %2183 = vmatpush1.msra.mxu0 0.0
  %2184 = vmatprep.subr.mxu0 0.0
  %2185 = vmatpush1.msra.mxu0 0.0
  %2186 = vmatprep.subr.mxu0 0.0
  %2187 = vmatpush1.msra.mxu0 0.0
  %2188 = vmatprep.subr.mxu0 0.0
  %2189 = vmatpush1.msra.mxu0 0.0
  %2190 = vmatprep.subr.mxu0 0.0
  %2191 = vmatpush1.msra.mxu0 0.0
  %2192 = vmatprep.subr.mxu0 0.0
  %2193 = vmatpush1.msra.mxu0 0.0
  %2194 = vmatprep.subr.mxu0 0.0
  %2195 = vmatpush1.msra.mxu0 0.0
  %2196 = vmatprep.subr.mxu0 0.0
  %2197 = vmatpush1.msra.mxu0 0.0
  %2198 = vmatprep.subr.mxu0 0.0
  %2199 = vmatpush1.msra.mxu0 0.0
  %2200 = vmatprep.subr.mxu0 0.0
  %2201 = vmatpush1.msra.mxu0 0.0
  %2202 = vmatprep.subr.mxu0 0.0
  %2203 = vmatpush1.msra.mxu0 0.0
  %2204 = vmatprep.subr.mxu0 0.0
  %2205 = vmatpush1.msra.mxu0 0.0
  %2206 = vmatprep.subr.mxu0 0.0
  %2207 = vmatpush1.msra.mxu0 0.0
  %2208 = vmatprep.mubr.f32.mxu0 0.0
  %v2209 = vand.u32 %v1733, 4294901760
  %v2210 = vsub.f32 %v1733, %v2209
  %v2211 = vand.u32 %v2210, 4294901760
  %2212 = vmatmul.mubr.f32.gmra.mrb[0].mxu0 %v2211
  %v2213 = vpop.f32.mrb[0].mxu0
  %v2214 = vadd.f32 %v2091, %v2213
  %v2215 = vpop.f32.mrb[0].mxu0
  %2216 = vmatprep.mubr.f32.mxu0 0.0
  %v2217 = vand.u32 %v1736, 4294901760
  %v2218 = vsub.f32 %v1736, %v2217
  %v2219 = vand.u32 %v2218, 4294901760
  %2220 = vmatmul.mubr.f32.gmra.mrb[0].mxu0 %v2219
  %v2221 = vpop.f32.mrb[0].mxu0
  %v2222 = vadd.f32 %v2098, %v2221
  %v2223 = vpop.f32.mrb[0].mxu0
  %2224 = vmatprep.mubr.f32.mxu0 0.0
  %v2225 = vand.u32 %v1739, 4294901760
  %v2226 = vsub.f32 %v1739, %v2225
  %v2227 = vand.u32 %v2226, 4294901760
  %2228 = vmatmul.mubr.f32.gmra.mrb[0].mxu0 %v2227
  %v2229 = vpop.f32.mrb[0].mxu0
  %v2230 = vadd.f32 %v2105, %v2229
  %v2231 = vpop.f32.mrb[0].mxu0
  %2232 = vmatprep.mubr.f32.mxu0 0.0
  %v2233 = vand.u32 %v1742, 4294901760
  %v2234 = vsub.f32 %v1742, %v2233
  %v2235 = vand.u32 %v2234, 4294901760
  %2236 = vmatmul.mubr.f32.gmra.mrb[0].mxu0 %v2235
  %v2237 = vpop.f32.mrb[0].mxu0
  %v2238 = vadd.f32 %v2112, %v2237
  %v2239 = vpop.f32.mrb[0].mxu0
  %2240 = vmatprep.mubr.f32.mxu0 0.0
  %v2241 = vand.u32 %v1745, 4294901760
  %v2242 = vsub.f32 %v1745, %v2241
  %v2243 = vand.u32 %v2242, 4294901760
  %2244 = vmatmul.mubr.f32.gmra.mrb[0].mxu0 %v2243
  %v2245 = vpop.f32.mrb[0].mxu0
  %v2246 = vadd.f32 %v2119, %v2245
  %v2247 = vpop.f32.mrb[0].mxu0
  %2248 = vmatprep.mubr.f32.mxu0 0.0
  %v2249 = vand.u32 %v1748, 4294901760
  %v2250 = vsub.f32 %v1748, %v2249
  %v2251 = vand.u32 %v2250, 4294901760
  %2252 = vmatmul.mubr.f32.gmra.mrb[0].mxu0 %v2251
  %v2253 = vpop.f32.mrb[0].mxu0
  %v2254 = vadd.f32 %v2126, %v2253
  %v2255 = vpop.f32.mrb[0].mxu0
  %2256 = vmatprep.mubr.f32.mxu0 0.0
  %v2257 = vand.u32 %v1751, 4294901760
  %v2258 = vsub.f32 %v1751, %v2257
  %v2259 = vand.u32 %v2258, 4294901760
  %2260 = vmatmul.mubr.f32.gmra.mrb[0].mxu0 %v2259
  %v2261 = vpop.f32.mrb[0].mxu0
  %v2262 = vadd.f32 %v2133, %v2261
  %v2263 = vpop.f32.mrb[0].mxu0
  %2264 = vmatprep.mubr.f32.mxu0 0.0
  %v2265 = vand.u32 %v1754, 4294901760
  %v2266 = vsub.f32 %v1754, %v2265
  %v2267 = vand.u32 %v2266, 4294901760
  %2268 = vmatmul.mubr.f32.gmra.mrb[0].mxu0 %v2267
  %v2269 = vpop.f32.mrb[0].mxu0
  %v2270 = vadd.f32 %v2140, %v2269
  %v2271 = vpop.f32.mrb[0].mxu0
  %2272 = vdwg.mxu0
  %2273 = vmatprep.subr.mxu0 0.0
  %v2274 = vand.u32 %v1707, 4294901760
  %v2275 = vsub.f32 %v1707, %v2274
  %v2276 = vand.u32 %v2275, 4294901760
  %2277 = vmatpush1.msra.mxu0 %v2276
  %2278 = vmatprep.subr.mxu0 0.0
  %2279 = vmatpush1.msra.mxu0 0.0
  %2280 = vmatprep.subr.mxu0 0.0
  %2281 = vmatpush1.msra.mxu0 0.0
  %2282 = vmatprep.subr.mxu0 0.0
  %2283 = vmatpush1.msra.mxu0 0.0
  %2284 = vmatprep.subr.mxu0 0.0
  %2285 = vmatpush1.msra.mxu0 0.0
  %2286 = vmatprep.subr.mxu0 0.0
  %2287 = vmatpush1.msra.mxu0 0.0
  %2288 = vmatprep.subr.mxu0 0.0
  %2289 = vmatpush1.msra.mxu0 0.0
  %2290 = vmatprep.subr.mxu0 0.0
  %2291 = vmatpush1.msra.mxu0 0.0
  %2292 = vmatprep.subr.mxu0 0.0
  %2293 = vmatpush1.msra.mxu0 0.0
  %2294 = vmatprep.subr.mxu0 0.0
  %2295 = vmatpush1.msra.mxu0 0.0
  %2296 = vmatprep.subr.mxu0 0.0
  %2297 = vmatpush1.msra.mxu0 0.0
  %2298 = vmatprep.subr.mxu0 0.0
  %2299 = vmatpush1.msra.mxu0 0.0
  %2300 = vmatprep.subr.mxu0 0.0
  %2301 = vmatpush1.msra.mxu0 0.0
  %2302 = vmatprep.subr.mxu0 0.0
  %2303 = vmatpush1.msra.mxu0 0.0
  %2304 = vmatprep.subr.mxu0 0.0
  %2305 = vmatpush1.msra.mxu0 0.0
  %2306 = vmatprep.subr.mxu0 0.0
  %2307 = vmatpush1.msra.mxu0 0.0
  %2308 = vmatprep.subr.mxu0 0.0
  %2309 = vmatpush1.msra.mxu0 0.0
  %2310 = vmatprep.subr.mxu0 0.0
  %2311 = vmatpush1.msra.mxu0 0.0
  %2312 = vmatprep.subr.mxu0 0.0
  %2313 = vmatpush1.msra.mxu0 0.0
  %2314 = vmatprep.subr.mxu0 0.0
  %2315 = vmatpush1.msra.mxu0 0.0
  %2316 = vmatprep.subr.mxu0 0.0
  %2317 = vmatpush1.msra.mxu0 0.0
  %2318 = vmatprep.subr.mxu0 0.0
  %2319 = vmatpush1.msra.mxu0 0.0
  %2320 = vmatprep.subr.mxu0 0.0
  %2321 = vmatpush1.msra.mxu0 0.0
  %2322 = vmatprep.subr.mxu0 0.0
  %2323 = vmatpush1.msra.mxu0 0.0
  %2324 = vmatprep.subr.mxu0 0.0
  %2325 = vmatpush1.msra.mxu0 0.0
  %2326 = vmatprep.subr.mxu0 0.0
  %2327 = vmatpush1.msra.mxu0 0.0
  %2328 = vmatprep.subr.mxu0 0.0
  %2329 = vmatpush1.msra.mxu0 0.0
  %2330 = vmatprep.subr.mxu0 0.0
  %2331 = vmatpush1.msra.mxu0 0.0
  %2332 = vmatprep.subr.mxu0 0.0
  %2333 = vmatpush1.msra.mxu0 0.0
  %2334 = vmatprep.subr.mxu0 0.0
  %2335 = vmatpush1.msra.mxu0 0.0
  %2336 = vmatprep.subr.mxu0 0.0
  %2337 = vmatpush1.msra.mxu0 0.0
  %2338 = vmatprep.subr.mxu0 0.0
  %2339 = vmatpush1.msra.mxu0 0.0
  %2340 = vmatprep.mubr.f32.mxu0 0.0
  %v2341 = vand.u32 %v1733, 4294901760
  %2342 = vmatmul.mubr.f32.gmra.mrb[0].mxu0 %v2341
  %v2343 = vpop.f32.mrb[0].mxu0
  %v2344 = vadd.f32 %v2214, %v2343
  %v2345 = vpop.f32.mrb[0].mxu0
  %2346 = vmatprep.mubr.f32.mxu0 0.0
  %v2347 = vand.u32 %v1736, 4294901760
  %2348 = vmatmul.mubr.f32.gmra.mrb[0].mxu0 %v2347
  %v2349 = vpop.f32.mrb[0].mxu0
  %v2350 = vadd.f32 %v2222, %v2349
  %v2351 = vpop.f32.mrb[0].mxu0
  %2352 = vmatprep.mubr.f32.mxu0 0.0
  %v2353 = vand.u32 %v1739, 4294901760
  %2354 = vmatmul.mubr.f32.gmra.mrb[0].mxu0 %v2353
  %v2355 = vpop.f32.mrb[0].mxu0
  %v2356 = vadd.f32 %v2230, %v2355
  %v2357 = vpop.f32.mrb[0].mxu0
  %2358 = vmatprep.mubr.f32.mxu0 0.0
  %v2359 = vand.u32 %v1742, 4294901760
  %2360 = vmatmul.mubr.f32.gmra.mrb[0].mxu0 %v2359
  %v2361 = vpop.f32.mrb[0].mxu0
  %v2362 = vadd.f32 %v2238, %v2361
  %v2363 = vpop.f32.mrb[0].mxu0
  %2364 = vmatprep.mubr.f32.mxu0 0.0
  %v2365 = vand.u32 %v1745, 4294901760
  %2366 = vmatmul.mubr.f32.gmra.mrb[0].mxu0 %v2365
  %v2367 = vpop.f32.mrb[0].mxu0
  %v2368 = vadd.f32 %v2246, %v2367
  %v2369 = vpop.f32.mrb[0].mxu0
  %2370 = vmatprep.mubr.f32.mxu0 0.0
  %v2371 = vand.u32 %v1748, 4294901760
  %2372 = vmatmul.mubr.f32.gmra.mrb[0].mxu0 %v2371
  %v2373 = vpop.f32.mrb[0].mxu0
  %v2374 = vadd.f32 %v2254, %v2373
  %v2375 = vpop.f32.mrb[0].mxu0
  %2376 = vmatprep.mubr.f32.mxu0 0.0
  %v2377 = vand.u32 %v1751, 4294901760
  %2378 = vmatmul.mubr.f32.gmra.mrb[0].mxu0 %v2377
  %v2379 = vpop.f32.mrb[0].mxu0
  %v2380 = vadd.f32 %v2262, %v2379
  %v2381 = vpop.f32.mrb[0].mxu0
  %2382 = vmatprep.mubr.f32.mxu0 0.0
  %v2383 = vand.u32 %v1754, 4294901760
  %2384 = vmatmul.mubr.f32.gmra.mrb[0].mxu0 %v2383
  %v2385 = vpop.f32.mrb[0].mxu0
  %v2386 = vadd.f32 %v2270, %v2385
  %v2387 = vpop.f32.mrb[0].mxu0
  %2388 = vdwg.mxu0
  %2389 = vmatprep.subr.mxu0 0.0
  %v2390 = vand.u32 %v1707, 4294901760
  %2391 = vmatpush1.msra.mxu0 %v2390
  %2392 = vmatprep.subr.mxu0 0.0
  %2393 = vmatpush1.msra.mxu0 0.0
  %2394 = vmatprep.subr.mxu0 0.0
  %2395 = vmatpush1.msra.mxu0 0.0
  %2396 = vmatprep.subr.mxu0 0.0
  %2397 = vmatpush1.msra.mxu0 0.0
  %2398 = vmatprep.subr.mxu0 0.0
  %2399 = vmatpush1.msra.mxu0 0.0
  %2400 = vmatprep.subr.mxu0 0.0
  %2401 = vmatpush1.msra.mxu0 0.0
  %2402 = vmatprep.subr.mxu0 0.0
  %2403 = vmatpush1.msra.mxu0 0.0
  %2404 = vmatprep.subr.mxu0 0.0
  %2405 = vmatpush1.msra.mxu0 0.0
  %2406 = vmatprep.subr.mxu0 0.0
  %2407 = vmatpush1.msra.mxu0 0.0
  %2408 = vmatprep.subr.mxu0 0.0
  %2409 = vmatpush1.msra.mxu0 0.0
  %2410 = vmatprep.subr.mxu0 0.0
  %2411 = vmatpush1.msra.mxu0 0.0
  %2412 = vmatprep.subr.mxu0 0.0
  %2413 = vmatpush1.msra.mxu0 0.0
  %2414 = vmatprep.subr.mxu0 0.0
  %2415 = vmatpush1.msra.mxu0 0.0
  %2416 = vmatprep.subr.mxu0 0.0
  %2417 = vmatpush1.msra.mxu0 0.0
  %2418 = vmatprep.subr.mxu0 0.0
  %2419 = vmatpush1.msra.mxu0 0.0
  %2420 = vmatprep.subr.mxu0 0.0
  %2421 = vmatpush1.msra.mxu0 0.0
  %2422 = vmatprep.subr.mxu0 0.0
  %2423 = vmatpush1.msra.mxu0 0.0
  %2424 = vmatprep.subr.mxu0 0.0
  %2425 = vmatpush1.msra.mxu0 0.0
  %2426 = vmatprep.subr.mxu0 0.0
  %2427 = vmatpush1.msra.mxu0 0.0
  %2428 = vmatprep.subr.mxu0 0.0
  %2429 = vmatpush1.msra.mxu0 0.0
  %2430 = vmatprep.subr.mxu0 0.0
  %2431 = vmatpush1.msra.mxu0 0.0
  %2432 = vmatprep.subr.mxu0 0.0
  %2433 = vmatpush1.msra.mxu0 0.0
  %2434 = vmatprep.subr.mxu0 0.0
  %2435 = vmatpush1.msra.mxu0 0.0
  %2436 = vmatprep.subr.mxu0 0.0
  %2437 = vmatpush1.msra.mxu0 0.0
  %2438 = vmatprep.subr.mxu0 0.0
  %2439 = vmatpush1.msra.mxu0 0.0
  %2440 = vmatprep.subr.mxu0 0.0
  %2441 = vmatpush1.msra.mxu0 0.0
  %2442 = vmatprep.subr.mxu0 0.0
  %2443 = vmatpush1.msra.mxu0 0.0
  %2444 = vmatprep.subr.mxu0 0.0
  %2445 = vmatpush1.msra.mxu0 0.0
  %2446 = vmatprep.subr.mxu0 0.0
  %2447 = vmatpush1.msra.mxu0 0.0
  %2448 = vmatprep.subr.mxu0 0.0
  %2449 = vmatpush1.msra.mxu0 0.0
  %2450 = vmatprep.subr.mxu0 0.0
  %2451 = vmatpush1.msra.mxu0 0.0
  %2452 = vmatprep.subr.mxu0 0.0
  %2453 = vmatpush1.msra.mxu0 0.0
  %2454 = vmatprep.mubr.f32.mxu0 0.0
  %v2455 = vand.u32 %v1733, 4294901760
  %2456 = vmatmul.mubr.f32.gmra.mrb[0].mxu0 %v2455
  %v2457 = vpop.f32.mrb[0].mxu0
  %v2458 = vadd.f32 %v2344, %v2457
  %v2459 = vpop.f32.mrb[0].mxu0
  %2460 = vmatprep.mubr.f32.mxu0 0.0
  %v2461 = vand.u32 %v1736, 4294901760
  %2462 = vmatmul.mubr.f32.gmra.mrb[0].mxu0 %v2461
  %v2463 = vpop.f32.mrb[0].mxu0
  %v2464 = vadd.f32 %v2350, %v2463
  %v2465 = vpop.f32.mrb[0].mxu0
  %2466 = vmatprep.mubr.f32.mxu0 0.0
  %v2467 = vand.u32 %v1739, 4294901760
  %2468 = vmatmul.mubr.f32.gmra.mrb[0].mxu0 %v2467
  %v2469 = vpop.f32.mrb[0].mxu0
  %v2470 = vadd.f32 %v2356, %v2469
  %v2471 = vpop.f32.mrb[0].mxu0
  %2472 = vmatprep.mubr.f32.mxu0 0.0
  %v2473 = vand.u32 %v1742, 4294901760
  %2474 = vmatmul.mubr.f32.gmra.mrb[0].mxu0 %v2473
  %v2475 = vpop.f32.mrb[0].mxu0
  %v2476 = vadd.f32 %v2362, %v2475
  %v2477 = vpop.f32.mrb[0].mxu0
  %2478 = vmatprep.mubr.f32.mxu0 0.0
  %v2479 = vand.u32 %v1745, 4294901760
  %2480 = vmatmul.mubr.f32.gmra.mrb[0].mxu0 %v2479
  %v2481 = vpop.f32.mrb[0].mxu0
  %v2482 = vadd.f32 %v2368, %v2481
  %v2483 = vpop.f32.mrb[0].mxu0
  %2484 = vmatprep.mubr.f32.mxu0 0.0
  %v2485 = vand.u32 %v1748, 4294901760
  %2486 = vmatmul.mubr.f32.gmra.mrb[0].mxu0 %v2485
  %v2487 = vpop.f32.mrb[0].mxu0
  %v2488 = vadd.f32 %v2374, %v2487
  %v2489 = vpop.f32.mrb[0].mxu0
  %2490 = vmatprep.mubr.f32.mxu0 0.0
  %v2491 = vand.u32 %v1751, 4294901760
  %2492 = vmatmul.mubr.f32.gmra.mrb[0].mxu0 %v2491
  %v2493 = vpop.f32.mrb[0].mxu0
  %v2494 = vadd.f32 %v2380, %v2493
  %v2495 = vpop.f32.mrb[0].mxu0
  %2496 = vmatprep.mubr.f32.mxu0 0.0
  %v2497 = vand.u32 %v1754, 4294901760
  %2498 = vmatmul.mubr.f32.gmra.mrb[0].mxu0 %v2497
  %v2499 = vpop.f32.mrb[0].mxu0
  %v2500 = vadd.f32 %v2386, %v2499
  %v2501 = vpop.f32.mrb[0].mxu0
  %2502 = vdwg.mxu0
  %vm2503 = vcmask 261120
  %2504 = vst.msk [vmem:[%s6] sm:$0xff] %vm2503, %v2458
  %2505 = vst.msk [vmem:[%s6 + $0x8] sm:$0xff] %vm2503, %v2464
  %2506 = vst.msk [vmem:[%s6 + $0x10] sm:$0xff] %vm2503, %v2470
  %2507 = vst.msk [vmem:[%s6 + $0x18] sm:$0xff] %vm2503, %v2476
  %2508 = vst.msk [vmem:[%s6 + $0x20] sm:$0xff] %vm2503, %v2482
  %2509 = vst.msk [vmem:[%s6 + $0x28] sm:$0xff] %vm2503, %v2488
  %2510 = vst.msk [vmem:[%s6 + $0x30] sm:$0xff] %vm2503, %v2494
  %2511 = vst.msk [vmem:[%s6 + $0x38] sm:$0xff] %vm2503, %v2500
  // Predicated region
  $region26: #{tpu_custom_call.1} parent=0 // pred_check
    _
  $region27: #{tpu_custom_call.1} parent=0 // pred_check_branch
    %2513 = sbr.rel (0) target = $region29
  $region28: #{tpu_custom_call.1} parent=0 // pred_region
    _
  $region29: #{tpu_custom_call.1} parent=0 // pred_fallthru
    _
  // Predicated region
  $region30: #{tpu_custom_call.1} parent=0 // pred_check
    _
  $region31: #{tpu_custom_call.1} parent=0 // pred_check_branch
    %2515 = sbr.rel (0) target = $region33
  $region32: #{tpu_custom_call.1} parent=0 // pred_region
    _
  $region33: #{tpu_custom_call.1} parent=0 // pred_fallthru
    _

</llo_original>
